<compile_context>
chip_gen: v6e
topology: v6e:2x2x1
jax: 0.10.0
libtpu: 0.0.40
codegen_flags: <defaults>
</compile_context>

<pallas_src>
import functools

import jax
import jax.numpy as jnp
from jax import lax
from jax.experimental import pallas as pl
from jax.experimental.pallas import tpu as pltpu  # noqa: F401  (kept for easy VMEM/grid tuning)


# ------------------------ fused LSTM + output-head kernel ------------------------

def fused_lstm_head_kernel(x_ref, p_ref, out_ref, *, S, Bp, H, E, SPK, NE):
    """Single-invocation kernel (no grid).

    x_ref:  (S*Bp, E)   time-major embedded input (row = t*Bp + b), f32
    p_ref:  (E+2H+16+4H, 4H) packed parameter slab (see prepare_params), f32
    out_ref:(S*Bp, 4H)  lane-dense log-softmax scores (lanes >= NE are padding)
    """
    LW = 4 * H

    # ---- static, 8-row-aligned views of the packed parameter slab (no extra DMAs) ----
    r_wih = 0
    r_whh = r_wih + E
    r_b   = r_whh + H
    r_wo  = r_b + 8
    r_bo  = r_wo + H
    r_emb = r_bo + 8

    wih  = p_ref[r_wih:r_whh, :]              # (E, 4H)
    whh  = p_ref[r_whh:r_b, :]                # (H, 4H)
    b    = p_ref[r_b:r_b + 1, :]              # (1, 4H)   b_ih + b_hh
    wo   = p_ref[r_wo:r_bo, :]                # (H, LW)   cols >= SPK are zero
    bo   = p_ref[r_bo:r_bo + 1, :]            # (1, LW)   cols >= SPK are zero
    embT = p_ref[r_emb:r_emb + LW, :]         # (LW, LW)  rows >= SPK / cols >= NE are zero

    # ---- phase 1: hoisted input projection (ONE matmul for all timesteps & gates) ----
    gates_x = jnp.dot(x_ref[...], wih, preferred_element_type=jnp.float32) + b   # (S*Bp, 4H)

    # Per-lane activation constants (hoisted: sigmoid(x) = 0.5*tanh(0.5x)+0.5, g-gate = tanh).
    lane = lax.broadcasted_iota(jnp.int32, (1, LW), 1)
    is_g = (lane >= 2 * H) & (lane < 3 * H)
    scale = jnp.where(is_g, 1.0, 0.5).astype(jnp.float32)   # pre-scale == post-scale
    offs  = jnp.where(is_g, 0.0, 0.5).astype(jnp.float32)

    # ---- phase 2: recurrence, fully unrolled; h/c live in vregs only ----
    h = jnp.zeros((Bp, H), jnp.float32)
    c = jnp.zeros((Bp, H), jnp.float32)
    hs = []
    for t in range(S):
        gx_t = gates_x[t * Bp:(t + 1) * Bp, :]                                   # 8-row aligned
        pre = gx_t + jnp.dot(h, whh, preferred_element_type=jnp.float32)         # one MXU push
        act = jnp.tanh(pre * scale) * scale + offs                               # one EUP pass
        i_g = act[:, 0:H]
        f_g = act[:, H:2 * H]
        g_g = act[:, 2 * H:3 * H]
        o_g = act[:, 3 * H:4 * H]
        c = f_g * c + i_g * g_g
        h = o_g * jnp.tanh(c)
        hs.append(h)                       # kept in vregs; never stored to scratch/HBM

    h_all = jnp.concatenate(hs, axis=0)    # (S*Bp, H)

    # ---- phase 3: fused output head (Linear -> tanh -> entity dot -> log_softmax) ----
    y = jnp.tanh(jnp.dot(h_all, wo, preferred_element_type=jnp.float32) + bo)    # (S*Bp, LW)
    scores = jnp.dot(y, embT, preferred_element_type=jnp.float32)                # (S*Bp, LW)

    # Stable log-softmax over the first NE lanes; padded lanes forced to -1e30 (f32-safe).
    lanes = lax.broadcasted_iota(jnp.int32, scores.shape, 1)
    s = jnp.where(lanes < NE, scores, -1e30)
    m = jnp.max(s, axis=-1, keepdims=True)
    lse = jnp.log(jnp.sum(jnp.exp(s - m), axis=-1, keepdims=True)) + m
    out_ref[...] = s - lse                                                       # lane-dense write


# --------------------------- param packing (once, at init) ---------------------------

def prepare_params(params):
    """Packs all constant operands into one lane-dense f32 slab. Run ONCE outside the jitted
    forward so no layout prep sits on the per-call critical path."""
    E = params["wih_t"].shape[0]
    H = params["whh_t"].shape[0]
    NE, SPK = params["speaker_emb"].shape
    LW = 4 * H
    assert LW % 128 == 0 and E % 8 == 0 and H % 8 == 0, "toy/production dims must be 8/128 aligned"
    assert SPK <= LW and NE <= LW

    def pad_lanes(a, width):
        out = jnp.zeros((a.shape[0], width), jnp.float32)
        return out.at[:, :a.shape[1]].set(a.astype(jnp.float32))

    wih = params["wih_t"].astype(jnp.float32)                                   # (E, 4H)
    whh = params["whh_t"].astype(jnp.float32)                                   # (H, 4H)
    b = jnp.zeros((8, LW), jnp.float32).at[0, :].set(params["b_lstm"][0])       # (8, 4H)
    wo = pad_lanes(params["wo_t"], LW)                                          # (H, LW)
    bo = jnp.zeros((8, LW), jnp.float32).at[0, :SPK].set(params["bo"][0])       # (8, LW)
    embT = jnp.zeros((LW, LW), jnp.float32).at[:SPK, :NE].set(
        params["speaker_emb"].T.astype(jnp.float32))                            # (LW, LW)

    slab = jnp.concatenate([wih, whh, b, wo, bo, embT], axis=0)                 # (E+2H+16+LW, LW)
    dims = dict(E=E, H=H, SPK=SPK, NE=NE)
    return slab, dims


# --------------------------- JAX glue (embedding) ---------------------------

def utterance_embed(padded_batch, token_emb, speaker_emb, padding_idx=-1):
    """UtteranceEmbedder._padded_embedding semantics (padding_idx -> zero rows)."""
    tok_ids = padded_batch[:, :, 0]
    tok_mask = tok_ids != padding_idx
    tok_e = jnp.where(tok_mask[..., None], token_emb[jnp.clip(tok_ids, 0, None)], 0.0)

    spk_ids = padded_batch[:, :, 2:]
    spk_mask = spk_ids != padding_idx
    spk_e = jnp.where(spk_mask[..., None],
                      speaker_emb[jnp.clip(spk_ids, 0, None)], 0.0).sum(axis=2)
    row_valid = spk_ids[:, :, 0] != padding_idx   # EmbeddingBag row gating (whole-row padding)
    spk_e = jnp.where(row_valid[..., None], spk_e, 0.0)

    return jnp.concatenate([tok_e, spk_e], axis=-1)

# TODO(synk): token/speaker embedding gathers (padding_idx=-1 masking) stay in plain JAX;
# a data-dependent gather has no clean BlockSpec form at these sizes.


def lstm_basic_forward(padded_batch, token_emb, speaker_emb, slab, *, E, H, SPK, NE):
    # input_to_lstm: embedder + tanh
    emb = jnp.tanh(utterance_embed(padded_batch, token_emb, speaker_emb))       # (B, S, E)
    B, S, _ = emb.shape

    # pad batch to a multiple of 8 sublanes; padded rows carry zeros and are discarded
    Bp = ((B + 7) // 8) * 8
    emb_p = jnp.zeros((Bp, S, E), jnp.float32).at[:B].set(emb)
    x_flat = jnp.transpose(emb_p, (1, 0, 2)).reshape(S * Bp, E)                 # row = t*Bp + b

    out_pad = pl.pallas_call(
        functools.partial(fused_lstm_head_kernel, S=S, Bp=Bp, H=H, E=E, SPK=SPK, NE=NE),
        out_shape=jax.ShapeDtypeStruct((S * Bp, 4 * H), jnp.float32),
    )(x_flat, slab)                                                             # 2 input DMAs total

    return out_pad.reshape(S, Bp, 4 * H)[:, :B, :NE].transpose(1, 0, 2)         # (B, S, NE)


# --------------------------- pure-JAX reference (for verification) ---------------------------

def reference_forward(padded_batch, params):
    emb = jnp.tanh(utterance_embed(padded_batch, params["token_emb"], params["speaker_emb"]))
    B, S, _ = emb.shape
    H = params["whh_t"].shape[0]

    def step(carry, x_t):
        h, c = carry
        g = x_t @ params["wih_t"] + h @ params["whh_t"] + params["b_lstm"][0]
        i = jax.nn.sigmoid(g[:, 0:H])
        f = jax.nn.sigmoid(g[:, H:2 * H])
        gg = jnp.tanh(g[:, 2 * H:3 * H])
        o = jax.nn.sigmoid(g[:, 3 * H:4 * H])
        c = f * c + i * gg
        h = o * jnp.tanh(c)
        return (h, c), h

    (_, _), hs = lax.scan(step, (jnp.zeros((B, H)), jnp.zeros((B, H))),
                          jnp.transpose(emb, (1, 0, 2)))
    hs = jnp.transpose(hs, (1, 0, 2))                                           # (B, S, H)
    y = jnp.tanh(hs @ params["wo_t"] + params["bo"][0])
    scores = y @ params["speaker_emb"].T
    return jax.nn.log_softmax(scores, axis=-1)


# ---------------------------------- main -----------------------------------

if __name__ == "__main__":
    B, S, K = 2, 8, 2          # batch, chunk size, speakers per row
    L = 2 + K                  # columns: token, scene, speaker ids
    VOCAB, NUM_ENT = 50, 16
    TOK_DIM, SPK_DIM = 32, 32  # embedder.embedding_dim = 64
    H = 32                     # args.hidden_lstm_1 (unidirectional)

    key = jax.random.PRNGKey(0)
    ks = jax.random.split(key, 8)

    params = {
        "token_emb":   jax.random.normal(ks[0], (VOCAB, TOK_DIM), jnp.float32) * 0.1,
        "speaker_emb": jax.random.normal(ks[1], (NUM_ENT, SPK_DIM), jnp.float32) * 0.1,
        # LSTM weights pre-transposed: (E, 4H), (H, 4H); bias = b_ih + b_hh (gate order i,f,g,o)
        "wih_t":  jax.random.normal(ks[2], (TOK_DIM + SPK_DIM, 4 * H), jnp.float32) * 0.1,
        "whh_t":  jax.random.normal(ks[3], (H, 4 * H), jnp.float32) * 0.1,
        "b_lstm": jax.random.normal(ks[4], (1, 4 * H), jnp.float32) * 0.1,
        # output Linear(H, SPK_DIM) pre-transposed
        "wo_t": jax.random.normal(ks[5], (H, SPK_DIM), jnp.float32) * 0.1,
        "bo":   jax.random.normal(ks[6], (1, SPK_DIM), jnp.float32) * 0.1,
    }

    # deterministic small integer batch; last row of batch 1 is fully padded (-1)
    kb = jax.random.split(ks[7], 3)
    tok = jax.random.randint(kb[0], (B, S, 1), 0, VOCAB, jnp.int32)
    scn = jax.random.randint(kb[1], (B, S, 1), 0, 10, jnp.int32)
    spk = jax.random.randint(kb[2], (B, S, K), 0, NUM_ENT, jnp.int32)
    padded_batch = jnp.concatenate([tok, scn, spk], axis=-1)
    padded_batch = padded_batch.at[1, S - 1].set(jnp.full((L,), -1, jnp.int32))

    # one-time param packing (hoisted out of the per-call path)
    slab, dims = prepare_params(params)
    fwd = jax.jit(functools.partial(lstm_basic_forward, **dims))

    out = jax.block_until_ready(fwd(padded_batch, params["token_emb"],
                                    params["speaker_emb"], slab))

    assert out.shape == (B, S, NUM_ENT), out.shape
    assert bool(jnp.all(jnp.isfinite(out)))
    # log_softmax rows sum to 1 in prob space
    assert bool(jnp.allclose(jnp.sum(jnp.exp(out), axis=-1), 1.0, atol=1e-4))
    # numerical parity with a pure-JAX LSTM reference
    ref = jax.block_until_ready(jax.jit(reference_forward)(padded_batch, params))
    assert bool(jnp.allclose(out, ref, atol=1e-4, rtol=1e-4)), float(jnp.max(jnp.abs(out - ref)))
    print("KERNEL_OK")
</pallas_src>

<mosaic_0001>
module attributes {stable_mosaic.version = 11 : i64} {
  func.func @fused_lstm_head_kernel(%arg0: memref<64x64xf32, #tpu.memory_space<vmem>>, %arg1: memref<272x128xf32, #tpu.memory_space<vmem>>, %arg2: memref<64x128xf32, #tpu.memory_space<vmem>>) attributes {dimension_semantics = [], scalar_prefetch = 0 : i64, scratch_operands = 0 : i64, tpu.core_type = #tpu.core_type<tc>} {
    %c0 = arith.constant 0 : index
    %c0_0 = arith.constant 0 : index
    %0 = vector.load %arg1[%c0, %c0_0] : memref<272x128xf32, #tpu.memory_space<vmem>>, vector<64x128xf32>
    %c64 = arith.constant 64 : index
    %c0_1 = arith.constant 0 : index
    %1 = vector.load %arg1[%c64, %c0_1] : memref<272x128xf32, #tpu.memory_space<vmem>>, vector<32x128xf32>
    %c96 = arith.constant 96 : index
    %c0_2 = arith.constant 0 : index
    %2 = vector.load %arg1[%c96, %c0_2] : memref<272x128xf32, #tpu.memory_space<vmem>>, vector<1x128xf32>
    %c104 = arith.constant 104 : index
    %c0_3 = arith.constant 0 : index
    %3 = vector.load %arg1[%c104, %c0_3] : memref<272x128xf32, #tpu.memory_space<vmem>>, vector<32x128xf32>
    %c136 = arith.constant 136 : index
    %c0_4 = arith.constant 0 : index
    %4 = vector.load %arg1[%c136, %c0_4] : memref<272x128xf32, #tpu.memory_space<vmem>>, vector<1x128xf32>
    %c144 = arith.constant 144 : index
    %c0_5 = arith.constant 0 : index
    %5 = vector.load %arg1[%c144, %c0_5] : memref<272x128xf32, #tpu.memory_space<vmem>>, vector<128x128xf32>
    %c0_6 = arith.constant 0 : index
    %c0_7 = arith.constant 0 : index
    %6 = vector.load %arg0[%c0_6, %c0_7] : memref<64x64xf32, #tpu.memory_space<vmem>>, vector<64x64xf32>
    %cst = arith.constant dense<0.000000e+00> : vector<64x128xf32>
    %7 = tpu.matmul %6, %0, %cst {dimension_numbers = #tpu.dot_dimension_numbers<[1], [0], [0], [1], [0, 0, 1, 1], [], []>} : vector<64x64xf32>, vector<64x128xf32>, vector<64x128xf32> -> vector<64x128xf32>
    %8 = vector.broadcast %2 : vector<1x128xf32> to vector<64x128xf32>
    %9 = arith.addf %7, %8 : vector<64x128xf32>
    %10 = tpu.iota {dimensions = array<i32: 1>} : vector<1x128xi32>
    %c64_i32 = arith.constant 64 : i32
    %11 = vector.broadcast %c64_i32 : i32 to vector<1x128xi32>
    %12 = arith.cmpi sge, %10, %11 : vector<1x128xi32>
    %c96_i32 = arith.constant 96 : i32
    %13 = vector.broadcast %c96_i32 : i32 to vector<1x128xi32>
    %14 = arith.cmpi slt, %10, %13 : vector<1x128xi32>
    %15 = arith.andi %12, %14 : vector<1x128xi1>
    %cst_8 = arith.constant 1.000000e+00 : f32
    %cst_9 = arith.constant 5.000000e-01 : f32
    %16 = vector.broadcast %cst_8 : f32 to vector<1x128xf32>
    %17 = vector.broadcast %cst_9 : f32 to vector<1x128xf32>
    %18 = arith.select %15, %16, %17 : vector<1x128xi1>, vector<1x128xf32>
    %cst_10 = arith.constant 0.000000e+00 : f32
    %cst_11 = arith.constant 5.000000e-01 : f32
    %19 = vector.broadcast %cst_10 : f32 to vector<1x128xf32>
    %20 = vector.broadcast %cst_11 : f32 to vector<1x128xf32>
    %21 = arith.select %15, %19, %20 : vector<1x128xi1>, vector<1x128xf32>
    %cst_12 = arith.constant 0.000000e+00 : f32
    %22 = vector.broadcast %cst_12 : f32 to vector<8x32xf32>
    %cst_13 = arith.constant 0.000000e+00 : f32
    %23 = vector.broadcast %cst_13 : f32 to vector<8x32xf32>
    %24 = vector.extract_strided_slice %9 {offsets = [0, 0], sizes = [8, 128], strides = [1, 1]} : vector<64x128xf32> to vector<8x128xf32>
    %cst_14 = arith.constant dense<0.000000e+00> : vector<8x128xf32>
    %25 = tpu.matmul %22, %1, %cst_14 {dimension_numbers = #tpu.dot_dimension_numbers<[1], [0], [0], [1], [0, 0, 1, 1], [], []>} : vector<8x32xf32>, vector<32x128xf32>, vector<8x128xf32> -> vector<8x128xf32>
    %26 = arith.addf %24, %25 : vector<8x128xf32>
    %27 = vector.broadcast %18 : vector<1x128xf32> to vector<8x128xf32>
    %28 = arith.mulf %26, %27 : vector<8x128xf32>
    %29 = math.tanh %28 : vector<8x128xf32>
    %30 = vector.broadcast %18 : vector<1x128xf32> to vector<8x128xf32>
    %31 = arith.mulf %29, %30 : vector<8x128xf32>
    %32 = vector.broadcast %21 : vector<1x128xf32> to vector<8x128xf32>
    %33 = arith.addf %31, %32 : vector<8x128xf32>
    %34 = vector.extract_strided_slice %33 {offsets = [0, 0], sizes = [8, 32], strides = [1, 1]} : vector<8x128xf32> to vector<8x32xf32>
    %35 = vector.extract_strided_slice %33 {offsets = [0, 32], sizes = [8, 32], strides = [1, 1]} : vector<8x128xf32> to vector<8x32xf32>
    %36 = vector.extract_strided_slice %33 {offsets = [0, 64], sizes = [8, 32], strides = [1, 1]} : vector<8x128xf32> to vector<8x32xf32>
    %37 = vector.extract_strided_slice %33 {offsets = [0, 96], sizes = [8, 32], strides = [1, 1]} : vector<8x128xf32> to vector<8x32xf32>
    %38 = arith.mulf %35, %23 : vector<8x32xf32>
    %39 = arith.mulf %34, %36 : vector<8x32xf32>
    %40 = arith.addf %38, %39 : vector<8x32xf32>
    %41 = math.tanh %40 : vector<8x32xf32>
    %42 = arith.mulf %37, %41 : vector<8x32xf32>
    %43 = vector.extract_strided_slice %9 {offsets = [8, 0], sizes = [8, 128], strides = [1, 1]} : vector<64x128xf32> to vector<8x128xf32>
    %cst_15 = arith.constant dense<0.000000e+00> : vector<8x128xf32>
    %44 = tpu.matmul %42, %1, %cst_15 {dimension_numbers = #tpu.dot_dimension_numbers<[1], [0], [0], [1], [0, 0, 1, 1], [], []>} : vector<8x32xf32>, vector<32x128xf32>, vector<8x128xf32> -> vector<8x128xf32>
    %45 = arith.addf %43, %44 : vector<8x128xf32>
    %46 = vector.broadcast %18 : vector<1x128xf32> to vector<8x128xf32>
    %47 = arith.mulf %45, %46 : vector<8x128xf32>
    %48 = math.tanh %47 : vector<8x128xf32>
    %49 = vector.broadcast %18 : vector<1x128xf32> to vector<8x128xf32>
    %50 = arith.mulf %48, %49 : vector<8x128xf32>
    %51 = vector.broadcast %21 : vector<1x128xf32> to vector<8x128xf32>
    %52 = arith.addf %50, %51 : vector<8x128xf32>
    %53 = vector.extract_strided_slice %52 {offsets = [0, 0], sizes = [8, 32], strides = [1, 1]} : vector<8x128xf32> to vector<8x32xf32>
    %54 = vector.extract_strided_slice %52 {offsets = [0, 32], sizes = [8, 32], strides = [1, 1]} : vector<8x128xf32> to vector<8x32xf32>
    %55 = vector.extract_strided_slice %52 {offsets = [0, 64], sizes = [8, 32], strides = [1, 1]} : vector<8x128xf32> to vector<8x32xf32>
    %56 = vector.extract_strided_slice %52 {offsets = [0, 96], sizes = [8, 32], strides = [1, 1]} : vector<8x128xf32> to vector<8x32xf32>
    %57 = arith.mulf %54, %40 : vector<8x32xf32>
    %58 = arith.mulf %53, %55 : vector<8x32xf32>
    %59 = arith.addf %57, %58 : vector<8x32xf32>
    %60 = math.tanh %59 : vector<8x32xf32>
    %61 = arith.mulf %56, %60 : vector<8x32xf32>
    %62 = vector.extract_strided_slice %9 {offsets = [16, 0], sizes = [8, 128], strides = [1, 1]} : vector<64x128xf32> to vector<8x128xf32>
    %cst_16 = arith.constant dense<0.000000e+00> : vector<8x128xf32>
    %63 = tpu.matmul %61, %1, %cst_16 {dimension_numbers = #tpu.dot_dimension_numbers<[1], [0], [0], [1], [0, 0, 1, 1], [], []>} : vector<8x32xf32>, vector<32x128xf32>, vector<8x128xf32> -> vector<8x128xf32>
    %64 = arith.addf %62, %63 : vector<8x128xf32>
    %65 = vector.broadcast %18 : vector<1x128xf32> to vector<8x128xf32>
    %66 = arith.mulf %64, %65 : vector<8x128xf32>
    %67 = math.tanh %66 : vector<8x128xf32>
    %68 = vector.broadcast %18 : vector<1x128xf32> to vector<8x128xf32>
    %69 = arith.mulf %67, %68 : vector<8x128xf32>
    %70 = vector.broadcast %21 : vector<1x128xf32> to vector<8x128xf32>
    %71 = arith.addf %69, %70 : vector<8x128xf32>
    %72 = vector.extract_strided_slice %71 {offsets = [0, 0], sizes = [8, 32], strides = [1, 1]} : vector<8x128xf32> to vector<8x32xf32>
    %73 = vector.extract_strided_slice %71 {offsets = [0, 32], sizes = [8, 32], strides = [1, 1]} : vector<8x128xf32> to vector<8x32xf32>
    %74 = vector.extract_strided_slice %71 {offsets = [0, 64], sizes = [8, 32], strides = [1, 1]} : vector<8x128xf32> to vector<8x32xf32>
    %75 = vector.extract_strided_slice %71 {offsets = [0, 96], sizes = [8, 32], strides = [1, 1]} : vector<8x128xf32> to vector<8x32xf32>
    %76 = arith.mulf %73, %59 : vector<8x32xf32>
    %77 = arith.mulf %72, %74 : vector<8x32xf32>
    %78 = arith.addf %76, %77 : vector<8x32xf32>
    %79 = math.tanh %78 : vector<8x32xf32>
    %80 = arith.mulf %75, %79 : vector<8x32xf32>
    %81 = vector.extract_strided_slice %9 {offsets = [24, 0], sizes = [8, 128], strides = [1, 1]} : vector<64x128xf32> to vector<8x128xf32>
    %cst_17 = arith.constant dense<0.000000e+00> : vector<8x128xf32>
    %82 = tpu.matmul %80, %1, %cst_17 {dimension_numbers = #tpu.dot_dimension_numbers<[1], [0], [0], [1], [0, 0, 1, 1], [], []>} : vector<8x32xf32>, vector<32x128xf32>, vector<8x128xf32> -> vector<8x128xf32>
    %83 = arith.addf %81, %82 : vector<8x128xf32>
    %84 = vector.broadcast %18 : vector<1x128xf32> to vector<8x128xf32>
    %85 = arith.mulf %83, %84 : vector<8x128xf32>
    %86 = math.tanh %85 : vector<8x128xf32>
    %87 = vector.broadcast %18 : vector<1x128xf32> to vector<8x128xf32>
    %88 = arith.mulf %86, %87 : vector<8x128xf32>
    %89 = vector.broadcast %21 : vector<1x128xf32> to vector<8x128xf32>
    %90 = arith.addf %88, %89 : vector<8x128xf32>
    %91 = vector.extract_strided_slice %90 {offsets = [0, 0], sizes = [8, 32], strides = [1, 1]} : vector<8x128xf32> to vector<8x32xf32>
    %92 = vector.extract_strided_slice %90 {offsets = [0, 32], sizes = [8, 32], strides = [1, 1]} : vector<8x128xf32> to vector<8x32xf32>
    %93 = vector.extract_strided_slice %90 {offsets = [0, 64], sizes = [8, 32], strides = [1, 1]} : vector<8x128xf32> to vector<8x32xf32>
    %94 = vector.extract_strided_slice %90 {offsets = [0, 96], sizes = [8, 32], strides = [1, 1]} : vector<8x128xf32> to vector<8x32xf32>
    %95 = arith.mulf %92, %78 : vector<8x32xf32>
    %96 = arith.mulf %91, %93 : vector<8x32xf32>
    %97 = arith.addf %95, %96 : vector<8x32xf32>
    %98 = math.tanh %97 : vector<8x32xf32>
    %99 = arith.mulf %94, %98 : vector<8x32xf32>
    %100 = vector.extract_strided_slice %9 {offsets = [32, 0], sizes = [8, 128], strides = [1, 1]} : vector<64x128xf32> to vector<8x128xf32>
    %cst_18 = arith.constant dense<0.000000e+00> : vector<8x128xf32>
    %101 = tpu.matmul %99, %1, %cst_18 {dimension_numbers = #tpu.dot_dimension_numbers<[1], [0], [0], [1], [0, 0, 1, 1], [], []>} : vector<8x32xf32>, vector<32x128xf32>, vector<8x128xf32> -> vector<8x128xf32>
    %102 = arith.addf %100, %101 : vector<8x128xf32>
    %103 = vector.broadcast %18 : vector<1x128xf32> to vector<8x128xf32>
    %104 = arith.mulf %102, %103 : vector<8x128xf32>
    %105 = math.tanh %104 : vector<8x128xf32>
    %106 = vector.broadcast %18 : vector<1x128xf32> to vector<8x128xf32>
    %107 = arith.mulf %105, %106 : vector<8x128xf32>
    %108 = vector.broadcast %21 : vector<1x128xf32> to vector<8x128xf32>
    %109 = arith.addf %107, %108 : vector<8x128xf32>
    %110 = vector.extract_strided_slice %109 {offsets = [0, 0], sizes = [8, 32], strides = [1, 1]} : vector<8x128xf32> to vector<8x32xf32>
    %111 = vector.extract_strided_slice %109 {offsets = [0, 32], sizes = [8, 32], strides = [1, 1]} : vector<8x128xf32> to vector<8x32xf32>
    %112 = vector.extract_strided_slice %109 {offsets = [0, 64], sizes = [8, 32], strides = [1, 1]} : vector<8x128xf32> to vector<8x32xf32>
    %113 = vector.extract_strided_slice %109 {offsets = [0, 96], sizes = [8, 32], strides = [1, 1]} : vector<8x128xf32> to vector<8x32xf32>
    %114 = arith.mulf %111, %97 : vector<8x32xf32>
    %115 = arith.mulf %110, %112 : vector<8x32xf32>
    %116 = arith.addf %114, %115 : vector<8x32xf32>
    %117 = math.tanh %116 : vector<8x32xf32>
    %118 = arith.mulf %113, %117 : vector<8x32xf32>
    %119 = vector.extract_strided_slice %9 {offsets = [40, 0], sizes = [8, 128], strides = [1, 1]} : vector<64x128xf32> to vector<8x128xf32>
    %cst_19 = arith.constant dense<0.000000e+00> : vector<8x128xf32>
    %120 = tpu.matmul %118, %1, %cst_19 {dimension_numbers = #tpu.dot_dimension_numbers<[1], [0], [0], [1], [0, 0, 1, 1], [], []>} : vector<8x32xf32>, vector<32x128xf32>, vector<8x128xf32> -> vector<8x128xf32>
    %121 = arith.addf %119, %120 : vector<8x128xf32>
    %122 = vector.broadcast %18 : vector<1x128xf32> to vector<8x128xf32>
    %123 = arith.mulf %121, %122 : vector<8x128xf32>
    %124 = math.tanh %123 : vector<8x128xf32>
    %125 = vector.broadcast %18 : vector<1x128xf32> to vector<8x128xf32>
    %126 = arith.mulf %124, %125 : vector<8x128xf32>
    %127 = vector.broadcast %21 : vector<1x128xf32> to vector<8x128xf32>
    %128 = arith.addf %126, %127 : vector<8x128xf32>
    %129 = vector.extract_strided_slice %128 {offsets = [0, 0], sizes = [8, 32], strides = [1, 1]} : vector<8x128xf32> to vector<8x32xf32>
    %130 = vector.extract_strided_slice %128 {offsets = [0, 32], sizes = [8, 32], strides = [1, 1]} : vector<8x128xf32> to vector<8x32xf32>
    %131 = vector.extract_strided_slice %128 {offsets = [0, 64], sizes = [8, 32], strides = [1, 1]} : vector<8x128xf32> to vector<8x32xf32>
    %132 = vector.extract_strided_slice %128 {offsets = [0, 96], sizes = [8, 32], strides = [1, 1]} : vector<8x128xf32> to vector<8x32xf32>
    %133 = arith.mulf %130, %116 : vector<8x32xf32>
    %134 = arith.mulf %129, %131 : vector<8x32xf32>
    %135 = arith.addf %133, %134 : vector<8x32xf32>
    %136 = math.tanh %135 : vector<8x32xf32>
    %137 = arith.mulf %132, %136 : vector<8x32xf32>
    %138 = vector.extract_strided_slice %9 {offsets = [48, 0], sizes = [8, 128], strides = [1, 1]} : vector<64x128xf32> to vector<8x128xf32>
    %cst_20 = arith.constant dense<0.000000e+00> : vector<8x128xf32>
    %139 = tpu.matmul %137, %1, %cst_20 {dimension_numbers = #tpu.dot_dimension_numbers<[1], [0], [0], [1], [0, 0, 1, 1], [], []>} : vector<8x32xf32>, vector<32x128xf32>, vector<8x128xf32> -> vector<8x128xf32>
    %140 = arith.addf %138, %139 : vector<8x128xf32>
    %141 = vector.broadcast %18 : vector<1x128xf32> to vector<8x128xf32>
    %142 = arith.mulf %140, %141 : vector<8x128xf32>
    %143 = math.tanh %142 : vector<8x128xf32>
    %144 = vector.broadcast %18 : vector<1x128xf32> to vector<8x128xf32>
    %145 = arith.mulf %143, %144 : vector<8x128xf32>
    %146 = vector.broadcast %21 : vector<1x128xf32> to vector<8x128xf32>
    %147 = arith.addf %145, %146 : vector<8x128xf32>
    %148 = vector.extract_strided_slice %147 {offsets = [0, 0], sizes = [8, 32], strides = [1, 1]} : vector<8x128xf32> to vector<8x32xf32>
    %149 = vector.extract_strided_slice %147 {offsets = [0, 32], sizes = [8, 32], strides = [1, 1]} : vector<8x128xf32> to vector<8x32xf32>
    %150 = vector.extract_strided_slice %147 {offsets = [0, 64], sizes = [8, 32], strides = [1, 1]} : vector<8x128xf32> to vector<8x32xf32>
    %151 = vector.extract_strided_slice %147 {offsets = [0, 96], sizes = [8, 32], strides = [1, 1]} : vector<8x128xf32> to vector<8x32xf32>
    %152 = arith.mulf %149, %135 : vector<8x32xf32>
    %153 = arith.mulf %148, %150 : vector<8x32xf32>
    %154 = arith.addf %152, %153 : vector<8x32xf32>
    %155 = math.tanh %154 : vector<8x32xf32>
    %156 = arith.mulf %151, %155 : vector<8x32xf32>
    %157 = vector.extract_strided_slice %9 {offsets = [56, 0], sizes = [8, 128], strides = [1, 1]} : vector<64x128xf32> to vector<8x128xf32>
    %cst_21 = arith.constant dense<0.000000e+00> : vector<8x128xf32>
    %158 = tpu.matmul %156, %1, %cst_21 {dimension_numbers = #tpu.dot_dimension_numbers<[1], [0], [0], [1], [0, 0, 1, 1], [], []>} : vector<8x32xf32>, vector<32x128xf32>, vector<8x128xf32> -> vector<8x128xf32>
    %159 = arith.addf %157, %158 : vector<8x128xf32>
    %160 = vector.broadcast %18 : vector<1x128xf32> to vector<8x128xf32>
    %161 = arith.mulf %159, %160 : vector<8x128xf32>
    %162 = math.tanh %161 : vector<8x128xf32>
    %163 = vector.broadcast %18 : vector<1x128xf32> to vector<8x128xf32>
    %164 = arith.mulf %162, %163 : vector<8x128xf32>
    %165 = vector.broadcast %21 : vector<1x128xf32> to vector<8x128xf32>
    %166 = arith.addf %164, %165 : vector<8x128xf32>
    %167 = vector.extract_strided_slice %166 {offsets = [0, 0], sizes = [8, 32], strides = [1, 1]} : vector<8x128xf32> to vector<8x32xf32>
    %168 = vector.extract_strided_slice %166 {offsets = [0, 32], sizes = [8, 32], strides = [1, 1]} : vector<8x128xf32> to vector<8x32xf32>
    %169 = vector.extract_strided_slice %166 {offsets = [0, 64], sizes = [8, 32], strides = [1, 1]} : vector<8x128xf32> to vector<8x32xf32>
    %170 = vector.extract_strided_slice %166 {offsets = [0, 96], sizes = [8, 32], strides = [1, 1]} : vector<8x128xf32> to vector<8x32xf32>
    %171 = arith.mulf %168, %154 : vector<8x32xf32>
    %172 = arith.mulf %167, %169 : vector<8x32xf32>
    %173 = arith.addf %171, %172 : vector<8x32xf32>
    %174 = math.tanh %173 : vector<8x32xf32>
    %175 = arith.mulf %170, %174 : vector<8x32xf32>
    %176 = tpu.concatenate %42, %61, %80, %99, %118, %137, %156, %175 in 0 : vector<8x32xf32>, vector<8x32xf32>, vector<8x32xf32>, vector<8x32xf32>, vector<8x32xf32>, vector<8x32xf32>, vector<8x32xf32>, vector<8x32xf32> -> vector<64x32xf32>
    %cst_22 = arith.constant dense<0.000000e+00> : vector<64x128xf32>
    %177 = tpu.matmul %176, %3, %cst_22 {dimension_numbers = #tpu.dot_dimension_numbers<[1], [0], [0], [1], [0, 0, 1, 1], [], []>} : vector<64x32xf32>, vector<32x128xf32>, vector<64x128xf32> -> vector<64x128xf32>
    %178 = vector.broadcast %4 : vector<1x128xf32> to vector<64x128xf32>
    %179 = arith.addf %177, %178 : vector<64x128xf32>
    %180 = math.tanh %179 : vector<64x128xf32>
    %cst_23 = arith.constant dense<0.000000e+00> : vector<64x128xf32>
    %181 = tpu.matmul %180, %5, %cst_23 {dimension_numbers = #tpu.dot_dimension_numbers<[1], [0], [0], [1], [0, 0, 1, 1], [], []>} : vector<64x128xf32>, vector<128x128xf32>, vector<64x128xf32> -> vector<64x128xf32>
    %182 = tpu.iota {dimensions = array<i32: 1>} : vector<64x128xi32>
    %c16_i32 = arith.constant 16 : i32
    %183 = vector.broadcast %c16_i32 : i32 to vector<64x128xi32>
    %184 = arith.cmpi slt, %182, %183 : vector<64x128xi32>
    %cst_24 = arith.constant -1.000000e+30 : f32
    %185 = vector.broadcast %cst_24 : f32 to vector<64x128xf32>
    %186 = arith.select %184, %181, %185 : vector<64x128xi1>, vector<64x128xf32>
    %cst_25 = arith.constant dense<0xFF800000> : vector<64xf32>
    %187 = vector.multi_reduction <maximumf>, %186, %cst_25 [1] : vector<64x128xf32> to vector<64xf32>
    %188 = vector.shape_cast %187 : vector<64xf32> to vector<64x1xf32>
    %189 = vector.broadcast %188 : vector<64x1xf32> to vector<64x128xf32>
    %190 = arith.subf %186, %189 : vector<64x128xf32>
    %191 = math.exp %190 : vector<64x128xf32>
    %cst_26 = arith.constant dense<0.000000e+00> : vector<64xf32>
    %192 = vector.multi_reduction <add>, %191, %cst_26 [1] : vector<64x128xf32> to vector<64xf32>
    %193 = vector.shape_cast %192 : vector<64xf32> to vector<64x1xf32>
    %194 = math.log %193 : vector<64x1xf32>
    %195 = arith.addf %194, %188 : vector<64x1xf32>
    %196 = vector.broadcast %195 : vector<64x1xf32> to vector<64x128xf32>
    %197 = arith.subf %186, %196 : vector<64x128xf32>
    %c0_27 = arith.constant 0 : index
    %c0_28 = arith.constant 0 : index
    %198 = vector.load %arg2[%c0_27, %c0_28] : memref<64x128xf32, #tpu.memory_space<vmem>>, vector<64x128xf32>
    tpu.vector_store %arg2[%c0_27, %c0_28], %197 {strides = array<i32>} : memref<64x128xf32, #tpu.memory_space<vmem>>, vector<64x128xf32>,
    return
  }
}

</mosaic_0001>

<llo_original>
// kernel: lstm_basic_forward.1
$region0: #{lstm_basic_forward.1}
  #allocation0 [shape = 'u32[]', space=smem, size = 0x4, offset = 0x4, fixed_abs, tag = 'smem constant byte address 0x4 - core index']
  #allocation1 [shape = 'u32[144,128]{1,0:T(1,128)}', space=vmem, size = 0x12000, scoped, tag = 'internal scratch']
  %s0 = inlined_call_operand.vmem [shape: f32[64,64], index: 0, kind: input, shape index: {}]
  %s1 = inlined_call_operand.vmem [shape: f32[272,128], index: 1, kind: input, shape index: {}]
  %s2 = inlined_call_operand.vmem [shape: f32[64,128], index: 2, kind: output, shape index: {}]
  %s3 = sld [smem:[#allocation0]]
  $region18: #{lstm_basic_forward.1} parent=0
    _
  %s5 = ssub.s32 1, %s3
  %s6 = scalar_select 0, %s5, %s3
  // Predicated region
  $region2: #{lstm_basic_forward.1} parent=0 // pred_check
    _
  $region3: #{lstm_basic_forward.1} parent=0 // pred_check_branch
    %8 = sbr.rel (0) target = $region5
  $region4: #{lstm_basic_forward.1} parent=0 // pred_region
    _
  $region5: #{lstm_basic_forward.1} parent=0 // pred_fallthru
    _
  // Predicated region
  $region6: #{lstm_basic_forward.1} parent=0 // pred_check
    _
  $region7: #{lstm_basic_forward.1} parent=0 // pred_check_branch
    %10 = sbr.rel (0) target = $region9
  $region8: #{lstm_basic_forward.1} parent=0 // pred_region
    _
  $region9: #{lstm_basic_forward.1} parent=0 // pred_fallthru
    _
  %v11 = vld [vmem:[%s1] sm:$0xff]
  %v12 = vld [vmem:[%s1 + $0x8] sm:$0xff]
  %v13 = vld [vmem:[%s1 + $0x10] sm:$0xff]
  %v14 = vld [vmem:[%s1 + $0x18] sm:$0xff]
  %v15 = vld [vmem:[%s1 + $0x20] sm:$0xff]
  %v16 = vld [vmem:[%s1 + $0x28] sm:$0xff]
  %v17 = vld [vmem:[%s1 + $0x30] sm:$0xff]
  %v18 = vld [vmem:[%s1 + $0x38] sm:$0xff]
  %v19 = vld [vmem:[%s1 + $0x40] sm:$0xff]
  %v20 = vld [vmem:[%s1 + $0x48] sm:$0xff]
  %v21 = vld [vmem:[%s1 + $0x50] sm:$0xff]
  %v22 = vld [vmem:[%s1 + $0x58] sm:$0xff]
  %v23 = vld [vmem:[%s1 + $0x60] sm:$0x1]
  %v24 = vld [vmem:[%s1 + $0x68] sm:$0xff]
  %v25 = vld [vmem:[%s1 + $0x70] sm:$0xff]
  %v26 = vld [vmem:[%s1 + $0x78] sm:$0xff]
  %v27 = vld [vmem:[%s1 + $0x80] sm:$0xff]
  %v28 = vld [vmem:[%s1 + $0x88] sm:$0x1]
  %v29 = vld [vmem:[%s1 + $0x90] sm:$0xff]
  %v30 = vld [vmem:[%s1 + $0x98] sm:$0xff]
  %v31 = vld [vmem:[%s1 + $0xa0] sm:$0xff]
  %v32 = vld [vmem:[%s1 + $0xa8] sm:$0xff]
  %v33 = vld [vmem:[%s1 + $0xb0] sm:$0xff]
  %v34 = vld [vmem:[%s1 + $0xb8] sm:$0xff]
  %v35 = vld [vmem:[%s1 + $0xc0] sm:$0xff]
  %v36 = vld [vmem:[%s1 + $0xc8] sm:$0xff]
  %v37 = vld [vmem:[%s1 + $0xd0] sm:$0xff]
  %v38 = vld [vmem:[%s1 + $0xd8] sm:$0xff]
  %v39 = vld [vmem:[%s1 + $0xe0] sm:$0xff]
  %v40 = vld [vmem:[%s1 + $0xe8] sm:$0xff]
  %v41 = vld [vmem:[%s1 + $0xf0] sm:$0xff]
  %v42 = vld [vmem:[%s1 + $0xf8] sm:$0xff]
  %v43 = vld [vmem:[%s1 + $0x100] sm:$0xff]
  %v44 = vld [vmem:[%s1 + $0x108] sm:$0xff]
  %v45 = vld [vmem:[%s0] sm:$0xff]
  %v46 = vld [vmem:[%s0 + $0x8] sm:$0xff]
  %v47 = vld [vmem:[%s0 + $0x10] sm:$0xff]
  %v48 = vld [vmem:[%s0 + $0x18] sm:$0xff]
  %v49 = vld [vmem:[%s0 + $0x20] sm:$0xff]
  %v50 = vld [vmem:[%s0 + $0x28] sm:$0xff]
  %v51 = vld [vmem:[%s0 + $0x30] sm:$0xff]
  %v52 = vld [vmem:[%s0 + $0x38] sm:$0xff]
  %v53 = vlaneseq
  %v54 = vshrl.u32 %v53, 7
  %v55 = vsub.s32 0, %v54
  %v56 = vrot.slane %v23, %v55
  %vm57 = vcmask 523264
  %v59 = vsel %vm57, %v45, 0
  %v62 = vsel %vm57, %v46, 0
  %v65 = vsel %vm57, %v47, 0
  %v68 = vsel %vm57, %v48, 0
  %v71 = vsel %vm57, %v49, 0
  %v74 = vsel %vm57, %v50, 0
  %v77 = vsel %vm57, %v51, 0
  %v80 = vsel %vm57, %v52, 0
  %82 = vmatprep.subr.mxu0 0.0
  %83 = vmatpush1.msra.mxu0 0.0
  %84 = vmatprep.subr.mxu0 0.0
  %85 = vmatpush1.msra.mxu0 0.0
  %86 = vmatprep.subr.mxu0 0.0
  %87 = vmatpush1.msra.mxu0 0.0
  %88 = vmatprep.subr.mxu0 0.0
  %89 = vmatpush1.msra.mxu0 0.0
  %90 = vmatprep.subr.mxu0 0.0
  %91 = vmatpush1.msra.mxu0 0.0
  %92 = vmatprep.subr.mxu0 0.0
  %93 = vmatpush1.msra.mxu0 0.0
  %94 = vmatprep.subr.mxu0 0.0
  %95 = vmatpush1.msra.mxu0 0.0
  %96 = vmatprep.subr.mxu0 0.0
  %97 = vmatpush1.msra.mxu0 0.0
  %98 = vmatprep.subr.mxu0 0.0
  %99 = vmatpush1.msra.mxu0 %v18
  %100 = vmatprep.subr.mxu0 0.0
  %101 = vmatpush1.msra.mxu0 %v17
  %102 = vmatprep.subr.mxu0 0.0
  %103 = vmatpush1.msra.mxu0 %v16
  %104 = vmatprep.subr.mxu0 0.0
  %105 = vmatpush1.msra.mxu0 %v15
  %106 = vmatprep.subr.mxu0 0.0
  %107 = vmatpush1.msra.mxu0 %v14
  %108 = vmatprep.subr.mxu0 0.0
  %109 = vmatpush1.msra.mxu0 %v13
  %110 = vmatprep.subr.mxu0 0.0
  %111 = vmatpush1.msra.mxu0 %v12
  %112 = vmatprep.subr.mxu0 0.0
  %113 = vmatpush1.msra.mxu0 %v11
  %114 = vmatprep.subr.mxu0 0.0
  %115 = vmatpush2.msra.mxu0 0.0
  %116 = vmatprep.subr.mxu0 0.0
  %117 = vmatpush2.msra.mxu0 0.0
  %118 = vmatprep.subr.mxu0 0.0
  %119 = vmatpush2.msra.mxu0 0.0
  %120 = vmatprep.subr.mxu0 0.0
  %121 = vmatpush2.msra.mxu0 0.0
  %122 = vmatprep.subr.mxu0 0.0
  %123 = vmatpush2.msra.mxu0 0.0
  %124 = vmatprep.subr.mxu0 0.0
  %125 = vmatpush2.msra.mxu0 0.0
  %126 = vmatprep.subr.mxu0 0.0
  %127 = vmatpush2.msra.mxu0 0.0
  %128 = vmatprep.subr.mxu0 0.0
  %129 = vmatpush2.msra.mxu0 0.0
  %130 = vmatprep.subr.mxu0 0.0
  %131 = vmatpush2.msra.mxu0 0.0
  %132 = vmatprep.subr.mxu0 0.0
  %133 = vmatpush2.msra.mxu0 0.0
  %134 = vmatprep.subr.mxu0 0.0
  %135 = vmatpush2.msra.mxu0 0.0
  %136 = vmatprep.subr.mxu0 0.0
  %137 = vmatpush2.msra.mxu0 0.0
  %138 = vmatprep.subr.mxu0 0.0
  %139 = vmatpush2.msra.mxu0 0.0
  %140 = vmatprep.subr.mxu0 0.0
  %141 = vmatpush2.msra.mxu0 0.0
  %142 = vmatprep.subr.mxu0 0.0
  %143 = vmatpush2.msra.mxu0 0.0
  %144 = vmatprep.subr.mxu0 0.0
  %145 = vmatpush2.msra.mxu0 0.0
  %146 = vmatprep.mubr.f32.mxu0 0.0
  %147 = vmatmul.mubr.f32.gmra.mxu0 %v59
  %v148 = vpop.f32.mrf.mxu0
  %v149 = vadd.f32 %v56, %v148
  %v150 = vpop.f32.mrf.mxu0
  %151 = vmatprep.mubr.f32.mxu0 0.0
  %152 = vmatmul.mubr.f32.gmra.mxu0 %v62
  %v153 = vpop.f32.mrf.mxu0
  %v154 = vadd.f32 %v56, %v153
  %v155 = vpop.f32.mrf.mxu0
  %156 = vmatprep.mubr.f32.mxu0 0.0
  %157 = vmatmul.mubr.f32.gmra.mxu0 %v65
  %v158 = vpop.f32.mrf.mxu0
  %v159 = vadd.f32 %v56, %v158
  %v160 = vpop.f32.mrf.mxu0
  %161 = vmatprep.mubr.f32.mxu0 0.0
  %162 = vmatmul.mubr.f32.gmra.mxu0 %v68
  %v163 = vpop.f32.mrf.mxu0
  %v164 = vadd.f32 %v56, %v163
  %v165 = vpop.f32.mrf.mxu0
  %166 = vmatprep.mubr.f32.mxu0 0.0
  %167 = vmatmul.mubr.f32.gmra.mxu0 %v71
  %v168 = vpop.f32.mrf.mxu0
  %v169 = vadd.f32 %v56, %v168
  %v170 = vpop.f32.mrf.mxu0
  %171 = vmatprep.mubr.f32.mxu0 0.0
  %172 = vmatmul.mubr.f32.gmra.mxu0 %v74
  %v173 = vpop.f32.mrf.mxu0
  %v174 = vadd.f32 %v56, %v173
  %v175 = vpop.f32.mrf.mxu0
  %176 = vmatprep.mubr.f32.mxu0 0.0
  %177 = vmatmul.mubr.f32.gmra.mxu0 %v77
  %v178 = vpop.f32.mrf.mxu0
  %v179 = vadd.f32 %v56, %v178
  %v180 = vpop.f32.mrf.mxu0
  %181 = vmatprep.mubr.f32.mxu0 0.0
  %182 = vmatmul.mubr.f32.gmra.mxu0 %v80
  %v183 = vpop.f32.mrf.mxu0
  %v184 = vadd.f32 %v56, %v183
  %v185 = vpop.f32.mrf.mxu0
  %186 = vdwg.mxu0
  %v187 = vlaneseq
  %v188 = vand.u32 %v187, 127
  %vm189 = vcmp.ge.s32.totalorder %v188, 64
  %vm190 = vcmp.lt.s32.totalorder %v188, 96
  %vm191 = vmand %vm189, %vm190
  %v192 = vsel %vm191, 1.0, 0.5
  %v193 = vsel %vm191, 0.0, 0.5
  %vm194 = vcmask 261120
  %v196 = vsel %vm194, 0.0, 0
  %198 = vmatprep.subr.mxu0 0.0
  %199 = vmatpush1.msra.mxu0 0.0
  %200 = vmatprep.subr.mxu0 0.0
  %201 = vmatpush1.msra.mxu0 0.0
  %202 = vmatprep.subr.mxu0 0.0
  %203 = vmatpush1.msra.mxu0 0.0
  %204 = vmatprep.subr.mxu0 0.0
  %205 = vmatpush1.msra.mxu0 0.0
  %206 = vmatprep.subr.mxu0 0.0
  %207 = vmatpush1.msra.mxu0 0.0
  %208 = vmatprep.subr.mxu0 0.0
  %209 = vmatpush1.msra.mxu0 0.0
  %210 = vmatprep.subr.mxu0 0.0
  %211 = vmatpush1.msra.mxu0 0.0
  %212 = vmatprep.subr.mxu0 0.0
  %213 = vmatpush1.msra.mxu0 0.0
  %214 = vmatprep.subr.mxu0 0.0
  %215 = vmatpush1.msra.mxu0 0.0
  %216 = vmatprep.subr.mxu0 0.0
  %217 = vmatpush1.msra.mxu0 0.0
  %218 = vmatprep.subr.mxu0 0.0
  %219 = vmatpush1.msra.mxu0 0.0
  %220 = vmatprep.subr.mxu0 0.0
  %221 = vmatpush1.msra.mxu0 0.0
  %222 = vmatprep.subr.mxu0 0.0
  %223 = vmatpush1.msra.mxu0 %v22
  %224 = vmatprep.subr.mxu0 0.0
  %225 = vmatpush1.msra.mxu0 %v21
  %226 = vmatprep.subr.mxu0 0.0
  %227 = vmatpush1.msra.mxu0 %v20
  %228 = vmatprep.subr.mxu0 0.0
  %229 = vmatpush1.msra.mxu0 %v19
  %230 = vmatprep.subr.mxu0 0.0
  %231 = vmatpush2.msra.mxu0 0.0
  %232 = vmatprep.subr.mxu0 0.0
  %233 = vmatpush2.msra.mxu0 0.0
  %234 = vmatprep.subr.mxu0 0.0
  %235 = vmatpush2.msra.mxu0 0.0
  %236 = vmatprep.subr.mxu0 0.0
  %237 = vmatpush2.msra.mxu0 0.0
  %238 = vmatprep.subr.mxu0 0.0
  %239 = vmatpush2.msra.mxu0 0.0
  %240 = vmatprep.subr.mxu0 0.0
  %241 = vmatpush2.msra.mxu0 0.0
  %242 = vmatprep.subr.mxu0 0.0
  %243 = vmatpush2.msra.mxu0 0.0
  %244 = vmatprep.subr.mxu0 0.0
  %245 = vmatpush2.msra.mxu0 0.0
  %246 = vmatprep.subr.mxu0 0.0
  %247 = vmatpush2.msra.mxu0 0.0
  %248 = vmatprep.subr.mxu0 0.0
  %249 = vmatpush2.msra.mxu0 0.0
  %250 = vmatprep.subr.mxu0 0.0
  %251 = vmatpush2.msra.mxu0 0.0
  %252 = vmatprep.subr.mxu0 0.0
  %253 = vmatpush2.msra.mxu0 0.0
  %254 = vmatprep.subr.mxu0 0.0
  %255 = vmatpush2.msra.mxu0 0.0
  %256 = vmatprep.subr.mxu0 0.0
  %257 = vmatpush2.msra.mxu0 0.0
  %258 = vmatprep.subr.mxu0 0.0
  %259 = vmatpush2.msra.mxu0 0.0
  %260 = vmatprep.subr.mxu0 0.0
  %261 = vmatpush2.msra.mxu0 0.0
  %262 = vmatprep.mubr.f32.mxu0 0.0
  %263 = vmatmul.mubr.f32.gmra.mxu0 %v196
  %v264 = vpop.f32.mrf.mxu0
  %v265 = vadd.f32 0.0, %v264
  %v266 = vpop.f32.mrf.mxu0
  %267 = vdwg.mxu0
  %v268 = vadd.f32 %v149, %v265
  %v269 = vmul.f32 %v268, %v192
  %v270 = vtanh.pop %v269
  %v271 = vmul.f32 %v270, %v192
  %v272 = vadd.f32 %v271, %v193
  %v273 = vmul.f32 %v272, 0.0
  %275 = vrot.lane.b32.xlu0 %v272, 64
  %v276 = vpop.permute.xlu0 %275
  %v278 = vmul.f32 %v272, %v276
  %280 = vrot.lane.b32.xlu0 %v278, 32
  %v281 = vpop.permute.xlu0 %280
  %v283 = vadd.f32 %v273, %v281
  %v284 = vtanh.pop %v283
  %286 = vrot.lane.b32.xlu0 %v284, 64
  %v287 = vpop.permute.xlu0 %286
  %v289 = vmul.f32 %v272, %v287
  %291 = vrot.lane.b32.xlu0 %v289, 32
  %v292 = vpop.permute.xlu0 %291
  %v293 = vsel %vm194, %v292, 0
  %295 = vmatprep.subr.mxu0 0.0
  %296 = vmatpush1.msra.mxu0 0.0
  %297 = vmatprep.subr.mxu0 0.0
  %298 = vmatpush1.msra.mxu0 0.0
  %299 = vmatprep.subr.mxu0 0.0
  %300 = vmatpush1.msra.mxu0 0.0
  %301 = vmatprep.subr.mxu0 0.0
  %302 = vmatpush1.msra.mxu0 0.0
  %303 = vmatprep.subr.mxu0 0.0
  %304 = vmatpush1.msra.mxu0 0.0
  %305 = vmatprep.subr.mxu0 0.0
  %306 = vmatpush1.msra.mxu0 0.0
  %307 = vmatprep.subr.mxu0 0.0
  %308 = vmatpush1.msra.mxu0 0.0
  %309 = vmatprep.subr.mxu0 0.0
  %310 = vmatpush1.msra.mxu0 0.0
  %311 = vmatprep.subr.mxu0 0.0
  %312 = vmatpush1.msra.mxu0 0.0
  %313 = vmatprep.subr.mxu0 0.0
  %314 = vmatpush1.msra.mxu0 0.0
  %315 = vmatprep.subr.mxu0 0.0
  %316 = vmatpush1.msra.mxu0 0.0
  %317 = vmatprep.subr.mxu0 0.0
  %318 = vmatpush1.msra.mxu0 0.0
  %319 = vmatprep.subr.mxu0 0.0
  %320 = vmatpush1.msra.mxu0 %v22
  %321 = vmatprep.subr.mxu0 0.0
  %322 = vmatpush1.msra.mxu0 %v21
  %323 = vmatprep.subr.mxu0 0.0
  %324 = vmatpush1.msra.mxu0 %v20
  %325 = vmatprep.subr.mxu0 0.0
  %326 = vmatpush1.msra.mxu0 %v19
  %327 = vmatprep.subr.mxu0 0.0
  %328 = vmatpush2.msra.mxu0 0.0
  %329 = vmatprep.subr.mxu0 0.0
  %330 = vmatpush2.msra.mxu0 0.0
  %331 = vmatprep.subr.mxu0 0.0
  %332 = vmatpush2.msra.mxu0 0.0
  %333 = vmatprep.subr.mxu0 0.0
  %334 = vmatpush2.msra.mxu0 0.0
  %335 = vmatprep.subr.mxu0 0.0
  %336 = vmatpush2.msra.mxu0 0.0
  %337 = vmatprep.subr.mxu0 0.0
  %338 = vmatpush2.msra.mxu0 0.0
  %339 = vmatprep.subr.mxu0 0.0
  %340 = vmatpush2.msra.mxu0 0.0
  %341 = vmatprep.subr.mxu0 0.0
  %342 = vmatpush2.msra.mxu0 0.0
  %343 = vmatprep.subr.mxu0 0.0
  %344 = vmatpush2.msra.mxu0 0.0
  %345 = vmatprep.subr.mxu0 0.0
  %346 = vmatpush2.msra.mxu0 0.0
  %347 = vmatprep.subr.mxu0 0.0
  %348 = vmatpush2.msra.mxu0 0.0
  %349 = vmatprep.subr.mxu0 0.0
  %350 = vmatpush2.msra.mxu0 0.0
  %351 = vmatprep.subr.mxu0 0.0
  %352 = vmatpush2.msra.mxu0 0.0
  %353 = vmatprep.subr.mxu0 0.0
  %354 = vmatpush2.msra.mxu0 0.0
  %355 = vmatprep.subr.mxu0 0.0
  %356 = vmatpush2.msra.mxu0 0.0
  %357 = vmatprep.subr.mxu0 0.0
  %358 = vmatpush2.msra.mxu0 0.0
  %359 = vmatprep.mubr.f32.mxu0 0.0
  %360 = vmatmul.mubr.f32.gmra.mxu0 %v293
  %v361 = vpop.f32.mrf.mxu0
  %v362 = vadd.f32 0.0, %v361
  %v363 = vpop.f32.mrf.mxu0
  %364 = vdwg.mxu0
  %v365 = vadd.f32 %v154, %v362
  %v366 = vmul.f32 %v365, %v192
  %v367 = vtanh.pop %v366
  %v368 = vmul.f32 %v367, %v192
  %v369 = vadd.f32 %v368, %v193
  %v370 = vmul.f32 %v369, %v283
  %372 = vrot.lane.b32.xlu0 %v369, 64
  %v373 = vpop.permute.xlu0 %372
  %v375 = vmul.f32 %v369, %v373
  %377 = vrot.lane.b32.xlu0 %v375, 32
  %v378 = vpop.permute.xlu0 %377
  %v380 = vadd.f32 %v370, %v378
  %v381 = vtanh.pop %v380
  %383 = vrot.lane.b32.xlu0 %v381, 64
  %v384 = vpop.permute.xlu0 %383
  %v386 = vmul.f32 %v369, %v384
  %388 = vrot.lane.b32.xlu0 %v386, 32
  %v389 = vpop.permute.xlu0 %388
  %v390 = vsel %vm194, %v389, 0
  %392 = vmatprep.subr.mxu0 0.0
  %393 = vmatpush1.msra.mxu0 0.0
  %394 = vmatprep.subr.mxu0 0.0
  %395 = vmatpush1.msra.mxu0 0.0
  %396 = vmatprep.subr.mxu0 0.0
  %397 = vmatpush1.msra.mxu0 0.0
  %398 = vmatprep.subr.mxu0 0.0
  %399 = vmatpush1.msra.mxu0 0.0
  %400 = vmatprep.subr.mxu0 0.0
  %401 = vmatpush1.msra.mxu0 0.0
  %402 = vmatprep.subr.mxu0 0.0
  %403 = vmatpush1.msra.mxu0 0.0
  %404 = vmatprep.subr.mxu0 0.0
  %405 = vmatpush1.msra.mxu0 0.0
  %406 = vmatprep.subr.mxu0 0.0
  %407 = vmatpush1.msra.mxu0 0.0
  %408 = vmatprep.subr.mxu0 0.0
  %409 = vmatpush1.msra.mxu0 0.0
  %410 = vmatprep.subr.mxu0 0.0
  %411 = vmatpush1.msra.mxu0 0.0
  %412 = vmatprep.subr.mxu0 0.0
  %413 = vmatpush1.msra.mxu0 0.0
  %414 = vmatprep.subr.mxu0 0.0
  %415 = vmatpush1.msra.mxu0 0.0
  %416 = vmatprep.subr.mxu0 0.0
  %417 = vmatpush1.msra.mxu0 %v22
  %418 = vmatprep.subr.mxu0 0.0
  %419 = vmatpush1.msra.mxu0 %v21
  %420 = vmatprep.subr.mxu0 0.0
  %421 = vmatpush1.msra.mxu0 %v20
  %422 = vmatprep.subr.mxu0 0.0
  %423 = vmatpush1.msra.mxu0 %v19
  %424 = vmatprep.subr.mxu0 0.0
  %425 = vmatpush2.msra.mxu0 0.0
  %426 = vmatprep.subr.mxu0 0.0
  %427 = vmatpush2.msra.mxu0 0.0
  %428 = vmatprep.subr.mxu0 0.0
  %429 = vmatpush2.msra.mxu0 0.0
  %430 = vmatprep.subr.mxu0 0.0
  %431 = vmatpush2.msra.mxu0 0.0
  %432 = vmatprep.subr.mxu0 0.0
  %433 = vmatpush2.msra.mxu0 0.0
  %434 = vmatprep.subr.mxu0 0.0
  %435 = vmatpush2.msra.mxu0 0.0
  %436 = vmatprep.subr.mxu0 0.0
  %437 = vmatpush2.msra.mxu0 0.0
  %438 = vmatprep.subr.mxu0 0.0
  %439 = vmatpush2.msra.mxu0 0.0
  %440 = vmatprep.subr.mxu0 0.0
  %441 = vmatpush2.msra.mxu0 0.0
  %442 = vmatprep.subr.mxu0 0.0
  %443 = vmatpush2.msra.mxu0 0.0
  %444 = vmatprep.subr.mxu0 0.0
  %445 = vmatpush2.msra.mxu0 0.0
  %446 = vmatprep.subr.mxu0 0.0
  %447 = vmatpush2.msra.mxu0 0.0
  %448 = vmatprep.subr.mxu0 0.0
  %449 = vmatpush2.msra.mxu0 0.0
  %450 = vmatprep.subr.mxu0 0.0
  %451 = vmatpush2.msra.mxu0 0.0
  %452 = vmatprep.subr.mxu0 0.0
  %453 = vmatpush2.msra.mxu0 0.0
  %454 = vmatprep.subr.mxu0 0.0
  %455 = vmatpush2.msra.mxu0 0.0
  %456 = vmatprep.mubr.f32.mxu0 0.0
  %457 = vmatmul.mubr.f32.gmra.mxu0 %v390
  %v458 = vpop.f32.mrf.mxu0
  %v459 = vadd.f32 0.0, %v458
  %v460 = vpop.f32.mrf.mxu0
  %461 = vdwg.mxu0
  %v462 = vadd.f32 %v159, %v459
  %v463 = vmul.f32 %v462, %v192
  %v464 = vtanh.pop %v463
  %v465 = vmul.f32 %v464, %v192
  %v466 = vadd.f32 %v465, %v193
  %v467 = vmul.f32 %v466, %v380
  %469 = vrot.lane.b32.xlu0 %v466, 64
  %v470 = vpop.permute.xlu0 %469
  %v472 = vmul.f32 %v466, %v470
  %474 = vrot.lane.b32.xlu0 %v472, 32
  %v475 = vpop.permute.xlu0 %474
  %v477 = vadd.f32 %v467, %v475
  %v478 = vtanh.pop %v477
  %480 = vrot.lane.b32.xlu0 %v478, 64
  %v481 = vpop.permute.xlu0 %480
  %v483 = vmul.f32 %v466, %v481
  %485 = vrot.lane.b32.xlu0 %v483, 32
  %v486 = vpop.permute.xlu0 %485
  %v487 = vsel %vm194, %v486, 0
  %489 = vmatprep.subr.mxu0 0.0
  %490 = vmatpush1.msra.mxu0 0.0
  %491 = vmatprep.subr.mxu0 0.0
  %492 = vmatpush1.msra.mxu0 0.0
  %493 = vmatprep.subr.mxu0 0.0
  %494 = vmatpush1.msra.mxu0 0.0
  %495 = vmatprep.subr.mxu0 0.0
  %496 = vmatpush1.msra.mxu0 0.0
  %497 = vmatprep.subr.mxu0 0.0
  %498 = vmatpush1.msra.mxu0 0.0
  %499 = vmatprep.subr.mxu0 0.0
  %500 = vmatpush1.msra.mxu0 0.0
  %501 = vmatprep.subr.mxu0 0.0
  %502 = vmatpush1.msra.mxu0 0.0
  %503 = vmatprep.subr.mxu0 0.0
  %504 = vmatpush1.msra.mxu0 0.0
  %505 = vmatprep.subr.mxu0 0.0
  %506 = vmatpush1.msra.mxu0 0.0
  %507 = vmatprep.subr.mxu0 0.0
  %508 = vmatpush1.msra.mxu0 0.0
  %509 = vmatprep.subr.mxu0 0.0
  %510 = vmatpush1.msra.mxu0 0.0
  %511 = vmatprep.subr.mxu0 0.0
  %512 = vmatpush1.msra.mxu0 0.0
  %513 = vmatprep.subr.mxu0 0.0
  %514 = vmatpush1.msra.mxu0 %v22
  %515 = vmatprep.subr.mxu0 0.0
  %516 = vmatpush1.msra.mxu0 %v21
  %517 = vmatprep.subr.mxu0 0.0
  %518 = vmatpush1.msra.mxu0 %v20
  %519 = vmatprep.subr.mxu0 0.0
  %520 = vmatpush1.msra.mxu0 %v19
  %521 = vmatprep.subr.mxu0 0.0
  %522 = vmatpush2.msra.mxu0 0.0
  %523 = vmatprep.subr.mxu0 0.0
  %524 = vmatpush2.msra.mxu0 0.0
  %525 = vmatprep.subr.mxu0 0.0
  %526 = vmatpush2.msra.mxu0 0.0
  %527 = vmatprep.subr.mxu0 0.0
  %528 = vmatpush2.msra.mxu0 0.0
  %529 = vmatprep.subr.mxu0 0.0
  %530 = vmatpush2.msra.mxu0 0.0
  %531 = vmatprep.subr.mxu0 0.0
  %532 = vmatpush2.msra.mxu0 0.0
  %533 = vmatprep.subr.mxu0 0.0
  %534 = vmatpush2.msra.mxu0 0.0
  %535 = vmatprep.subr.mxu0 0.0
  %536 = vmatpush2.msra.mxu0 0.0
  %537 = vmatprep.subr.mxu0 0.0
  %538 = vmatpush2.msra.mxu0 0.0
  %539 = vmatprep.subr.mxu0 0.0
  %540 = vmatpush2.msra.mxu0 0.0
  %541 = vmatprep.subr.mxu0 0.0
  %542 = vmatpush2.msra.mxu0 0.0
  %543 = vmatprep.subr.mxu0 0.0
  %544 = vmatpush2.msra.mxu0 0.0
  %545 = vmatprep.subr.mxu0 0.0
  %546 = vmatpush2.msra.mxu0 0.0
  %547 = vmatprep.subr.mxu0 0.0
  %548 = vmatpush2.msra.mxu0 0.0
  %549 = vmatprep.subr.mxu0 0.0
  %550 = vmatpush2.msra.mxu0 0.0
  %551 = vmatprep.subr.mxu0 0.0
  %552 = vmatpush2.msra.mxu0 0.0
  %553 = vmatprep.mubr.f32.mxu0 0.0
  %554 = vmatmul.mubr.f32.gmra.mxu0 %v487
  %v555 = vpop.f32.mrf.mxu0
  %v556 = vadd.f32 0.0, %v555
  %v557 = vpop.f32.mrf.mxu0
  %558 = vdwg.mxu0
  %v559 = vadd.f32 %v164, %v556
  %v560 = vmul.f32 %v559, %v192
  %v561 = vtanh.pop %v560
  %v562 = vmul.f32 %v561, %v192
  %v563 = vadd.f32 %v562, %v193
  %v564 = vmul.f32 %v563, %v477
  %566 = vrot.lane.b32.xlu0 %v563, 64
  %v567 = vpop.permute.xlu0 %566
  %v569 = vmul.f32 %v563, %v567
  %571 = vrot.lane.b32.xlu0 %v569, 32
  %v572 = vpop.permute.xlu0 %571
  %v574 = vadd.f32 %v564, %v572
  %v575 = vtanh.pop %v574
  %577 = vrot.lane.b32.xlu0 %v575, 64
  %v578 = vpop.permute.xlu0 %577
  %v580 = vmul.f32 %v563, %v578
  %582 = vrot.lane.b32.xlu0 %v580, 32
  %v583 = vpop.permute.xlu0 %582
  %v584 = vsel %vm194, %v583, 0
  %586 = vmatprep.subr.mxu0 0.0
  %587 = vmatpush1.msra.mxu0 0.0
  %588 = vmatprep.subr.mxu0 0.0
  %589 = vmatpush1.msra.mxu0 0.0
  %590 = vmatprep.subr.mxu0 0.0
  %591 = vmatpush1.msra.mxu0 0.0
  %592 = vmatprep.subr.mxu0 0.0
  %593 = vmatpush1.msra.mxu0 0.0
  %594 = vmatprep.subr.mxu0 0.0
  %595 = vmatpush1.msra.mxu0 0.0
  %596 = vmatprep.subr.mxu0 0.0
  %597 = vmatpush1.msra.mxu0 0.0
  %598 = vmatprep.subr.mxu0 0.0
  %599 = vmatpush1.msra.mxu0 0.0
  %600 = vmatprep.subr.mxu0 0.0
  %601 = vmatpush1.msra.mxu0 0.0
  %602 = vmatprep.subr.mxu0 0.0
  %603 = vmatpush1.msra.mxu0 0.0
  %604 = vmatprep.subr.mxu0 0.0
  %605 = vmatpush1.msra.mxu0 0.0
  %606 = vmatprep.subr.mxu0 0.0
  %607 = vmatpush1.msra.mxu0 0.0
  %608 = vmatprep.subr.mxu0 0.0
  %609 = vmatpush1.msra.mxu0 0.0
  %610 = vmatprep.subr.mxu0 0.0
  %611 = vmatpush1.msra.mxu0 %v22
  %612 = vmatprep.subr.mxu0 0.0
  %613 = vmatpush1.msra.mxu0 %v21
  %614 = vmatprep.subr.mxu0 0.0
  %615 = vmatpush1.msra.mxu0 %v20
  %616 = vmatprep.subr.mxu0 0.0
  %617 = vmatpush1.msra.mxu0 %v19
  %618 = vmatprep.subr.mxu0 0.0
  %619 = vmatpush2.msra.mxu0 0.0
  %620 = vmatprep.subr.mxu0 0.0
  %621 = vmatpush2.msra.mxu0 0.0
  %622 = vmatprep.subr.mxu0 0.0
  %623 = vmatpush2.msra.mxu0 0.0
  %624 = vmatprep.subr.mxu0 0.0
  %625 = vmatpush2.msra.mxu0 0.0
  %626 = vmatprep.subr.mxu0 0.0
  %627 = vmatpush2.msra.mxu0 0.0
  %628 = vmatprep.subr.mxu0 0.0
  %629 = vmatpush2.msra.mxu0 0.0
  %630 = vmatprep.subr.mxu0 0.0
  %631 = vmatpush2.msra.mxu0 0.0
  %632 = vmatprep.subr.mxu0 0.0
  %633 = vmatpush2.msra.mxu0 0.0
  %634 = vmatprep.subr.mxu0 0.0
  %635 = vmatpush2.msra.mxu0 0.0
  %636 = vmatprep.subr.mxu0 0.0
  %637 = vmatpush2.msra.mxu0 0.0
  %638 = vmatprep.subr.mxu0 0.0
  %639 = vmatpush2.msra.mxu0 0.0
  %640 = vmatprep.subr.mxu0 0.0
  %641 = vmatpush2.msra.mxu0 0.0
  %642 = vmatprep.subr.mxu0 0.0
  %643 = vmatpush2.msra.mxu0 0.0
  %644 = vmatprep.subr.mxu0 0.0
  %645 = vmatpush2.msra.mxu0 0.0
  %646 = vmatprep.subr.mxu0 0.0
  %647 = vmatpush2.msra.mxu0 0.0
  %648 = vmatprep.subr.mxu0 0.0
  %649 = vmatpush2.msra.mxu0 0.0
  %650 = vmatprep.mubr.f32.mxu0 0.0
  %651 = vmatmul.mubr.f32.gmra.mxu0 %v584
  %v652 = vpop.f32.mrf.mxu0
  %v653 = vadd.f32 0.0, %v652
  %v654 = vpop.f32.mrf.mxu0
  %655 = vdwg.mxu0
  %v656 = vadd.f32 %v169, %v653
  %v657 = vmul.f32 %v656, %v192
  %v658 = vtanh.pop %v657
  %v659 = vmul.f32 %v658, %v192
  %v660 = vadd.f32 %v659, %v193
  %v661 = vmul.f32 %v660, %v574
  %663 = vrot.lane.b32.xlu0 %v660, 64
  %v664 = vpop.permute.xlu0 %663
  %v666 = vmul.f32 %v660, %v664
  %668 = vrot.lane.b32.xlu0 %v666, 32
  %v669 = vpop.permute.xlu0 %668
  %v671 = vadd.f32 %v661, %v669
  %v672 = vtanh.pop %v671
  %674 = vrot.lane.b32.xlu0 %v672, 64
  %v675 = vpop.permute.xlu0 %674
  %v677 = vmul.f32 %v660, %v675
  %679 = vrot.lane.b32.xlu0 %v677, 32
  %v680 = vpop.permute.xlu0 %679
  %v681 = vsel %vm194, %v680, 0
  %683 = vmatprep.subr.mxu0 0.0
  %684 = vmatpush1.msra.mxu0 0.0
  %685 = vmatprep.subr.mxu0 0.0
  %686 = vmatpush1.msra.mxu0 0.0
  %687 = vmatprep.subr.mxu0 0.0
  %688 = vmatpush1.msra.mxu0 0.0
  %689 = vmatprep.subr.mxu0 0.0
  %690 = vmatpush1.msra.mxu0 0.0
  %691 = vmatprep.subr.mxu0 0.0
  %692 = vmatpush1.msra.mxu0 0.0
  %693 = vmatprep.subr.mxu0 0.0
  %694 = vmatpush1.msra.mxu0 0.0
  %695 = vmatprep.subr.mxu0 0.0
  %696 = vmatpush1.msra.mxu0 0.0
  %697 = vmatprep.subr.mxu0 0.0
  %698 = vmatpush1.msra.mxu0 0.0
  %699 = vmatprep.subr.mxu0 0.0
  %700 = vmatpush1.msra.mxu0 0.0
  %701 = vmatprep.subr.mxu0 0.0
  %702 = vmatpush1.msra.mxu0 0.0
  %703 = vmatprep.subr.mxu0 0.0
  %704 = vmatpush1.msra.mxu0 0.0
  %705 = vmatprep.subr.mxu0 0.0
  %706 = vmatpush1.msra.mxu0 0.0
  %707 = vmatprep.subr.mxu0 0.0
  %708 = vmatpush1.msra.mxu0 %v22
  %709 = vmatprep.subr.mxu0 0.0
  %710 = vmatpush1.msra.mxu0 %v21
  %711 = vmatprep.subr.mxu0 0.0
  %712 = vmatpush1.msra.mxu0 %v20
  %713 = vmatprep.subr.mxu0 0.0
  %714 = vmatpush1.msra.mxu0 %v19
  %715 = vmatprep.subr.mxu0 0.0
  %716 = vmatpush2.msra.mxu0 0.0
  %717 = vmatprep.subr.mxu0 0.0
  %718 = vmatpush2.msra.mxu0 0.0
  %719 = vmatprep.subr.mxu0 0.0
  %720 = vmatpush2.msra.mxu0 0.0
  %721 = vmatprep.subr.mxu0 0.0
  %722 = vmatpush2.msra.mxu0 0.0
  %723 = vmatprep.subr.mxu0 0.0
  %724 = vmatpush2.msra.mxu0 0.0
  %725 = vmatprep.subr.mxu0 0.0
  %726 = vmatpush2.msra.mxu0 0.0
  %727 = vmatprep.subr.mxu0 0.0
  %728 = vmatpush2.msra.mxu0 0.0
  %729 = vmatprep.subr.mxu0 0.0
  %730 = vmatpush2.msra.mxu0 0.0
  %731 = vmatprep.subr.mxu0 0.0
  %732 = vmatpush2.msra.mxu0 0.0
  %733 = vmatprep.subr.mxu0 0.0
  %734 = vmatpush2.msra.mxu0 0.0
  %735 = vmatprep.subr.mxu0 0.0
  %736 = vmatpush2.msra.mxu0 0.0
  %737 = vmatprep.subr.mxu0 0.0
  %738 = vmatpush2.msra.mxu0 0.0
  %739 = vmatprep.subr.mxu0 0.0
  %740 = vmatpush2.msra.mxu0 0.0
  %741 = vmatprep.subr.mxu0 0.0
  %742 = vmatpush2.msra.mxu0 0.0
  %743 = vmatprep.subr.mxu0 0.0
  %744 = vmatpush2.msra.mxu0 0.0
  %745 = vmatprep.subr.mxu0 0.0
  %746 = vmatpush2.msra.mxu0 0.0
  %747 = vmatprep.mubr.f32.mxu0 0.0
  %748 = vmatmul.mubr.f32.gmra.mxu0 %v681
  %v749 = vpop.f32.mrf.mxu0
  %v750 = vadd.f32 0.0, %v749
  %v751 = vpop.f32.mrf.mxu0
  %752 = vdwg.mxu0
  %v753 = vadd.f32 %v174, %v750
  %v754 = vmul.f32 %v753, %v192
  %v755 = vtanh.pop %v754
  %v756 = vmul.f32 %v755, %v192
  %v757 = vadd.f32 %v756, %v193
  %v758 = vmul.f32 %v757, %v671
  %760 = vrot.lane.b32.xlu0 %v757, 64
  %v761 = vpop.permute.xlu0 %760
  %v763 = vmul.f32 %v757, %v761
  %765 = vrot.lane.b32.xlu0 %v763, 32
  %v766 = vpop.permute.xlu0 %765
  %v768 = vadd.f32 %v758, %v766
  %v769 = vtanh.pop %v768
  %771 = vrot.lane.b32.xlu0 %v769, 64
  %v772 = vpop.permute.xlu0 %771
  %v774 = vmul.f32 %v757, %v772
  %776 = vrot.lane.b32.xlu0 %v774, 32
  %v777 = vpop.permute.xlu0 %776
  %v778 = vsel %vm194, %v777, 0
  %780 = vmatprep.subr.mxu0 0.0
  %781 = vmatpush1.msra.mxu0 0.0
  %782 = vmatprep.subr.mxu0 0.0
  %783 = vmatpush1.msra.mxu0 0.0
  %784 = vmatprep.subr.mxu0 0.0
  %785 = vmatpush1.msra.mxu0 0.0
  %786 = vmatprep.subr.mxu0 0.0
  %787 = vmatpush1.msra.mxu0 0.0
  %788 = vmatprep.subr.mxu0 0.0
  %789 = vmatpush1.msra.mxu0 0.0
  %790 = vmatprep.subr.mxu0 0.0
  %791 = vmatpush1.msra.mxu0 0.0
  %792 = vmatprep.subr.mxu0 0.0
  %793 = vmatpush1.msra.mxu0 0.0
  %794 = vmatprep.subr.mxu0 0.0
  %795 = vmatpush1.msra.mxu0 0.0
  %796 = vmatprep.subr.mxu0 0.0
  %797 = vmatpush1.msra.mxu0 0.0
  %798 = vmatprep.subr.mxu0 0.0
  %799 = vmatpush1.msra.mxu0 0.0
  %800 = vmatprep.subr.mxu0 0.0
  %801 = vmatpush1.msra.mxu0 0.0
  %802 = vmatprep.subr.mxu0 0.0
  %803 = vmatpush1.msra.mxu0 0.0
  %804 = vmatprep.subr.mxu0 0.0
  %805 = vmatpush1.msra.mxu0 %v22
  %806 = vmatprep.subr.mxu0 0.0
  %807 = vmatpush1.msra.mxu0 %v21
  %808 = vmatprep.subr.mxu0 0.0
  %809 = vmatpush1.msra.mxu0 %v20
  %810 = vmatprep.subr.mxu0 0.0
  %811 = vmatpush1.msra.mxu0 %v19
  %812 = vmatprep.subr.mxu0 0.0
  %813 = vmatpush2.msra.mxu0 0.0
  %814 = vmatprep.subr.mxu0 0.0
  %815 = vmatpush2.msra.mxu0 0.0
  %816 = vmatprep.subr.mxu0 0.0
  %817 = vmatpush2.msra.mxu0 0.0
  %818 = vmatprep.subr.mxu0 0.0
  %819 = vmatpush2.msra.mxu0 0.0
  %820 = vmatprep.subr.mxu0 0.0
  %821 = vmatpush2.msra.mxu0 0.0
  %822 = vmatprep.subr.mxu0 0.0
  %823 = vmatpush2.msra.mxu0 0.0
  %824 = vmatprep.subr.mxu0 0.0
  %825 = vmatpush2.msra.mxu0 0.0
  %826 = vmatprep.subr.mxu0 0.0
  %827 = vmatpush2.msra.mxu0 0.0
  %828 = vmatprep.subr.mxu0 0.0
  %829 = vmatpush2.msra.mxu0 0.0
  %830 = vmatprep.subr.mxu0 0.0
  %831 = vmatpush2.msra.mxu0 0.0
  %832 = vmatprep.subr.mxu0 0.0
  %833 = vmatpush2.msra.mxu0 0.0
  %834 = vmatprep.subr.mxu0 0.0
  %835 = vmatpush2.msra.mxu0 0.0
  %836 = vmatprep.subr.mxu0 0.0
  %837 = vmatpush2.msra.mxu0 0.0
  %838 = vmatprep.subr.mxu0 0.0
  %839 = vmatpush2.msra.mxu0 0.0
  %840 = vmatprep.subr.mxu0 0.0
  %841 = vmatpush2.msra.mxu0 0.0
  %842 = vmatprep.subr.mxu0 0.0
  %843 = vmatpush2.msra.mxu0 0.0
  %844 = vmatprep.mubr.f32.mxu0 0.0
  %845 = vmatmul.mubr.f32.gmra.mxu0 %v778
  %v846 = vpop.f32.mrf.mxu0
  %v847 = vadd.f32 0.0, %v846
  %v848 = vpop.f32.mrf.mxu0
  %849 = vdwg.mxu0
  %v850 = vadd.f32 %v179, %v847
  %v851 = vmul.f32 %v850, %v192
  %v852 = vtanh.pop %v851
  %v853 = vmul.f32 %v852, %v192
  %v854 = vadd.f32 %v853, %v193
  %v855 = vmul.f32 %v854, %v768
  %857 = vrot.lane.b32.xlu0 %v854, 64
  %v858 = vpop.permute.xlu0 %857
  %v860 = vmul.f32 %v854, %v858
  %862 = vrot.lane.b32.xlu0 %v860, 32
  %v863 = vpop.permute.xlu0 %862
  %v865 = vadd.f32 %v855, %v863
  %v866 = vtanh.pop %v865
  %868 = vrot.lane.b32.xlu0 %v866, 64
  %v869 = vpop.permute.xlu0 %868
  %v871 = vmul.f32 %v854, %v869
  %873 = vrot.lane.b32.xlu0 %v871, 32
  %v874 = vpop.permute.xlu0 %873
  %v875 = vsel %vm194, %v874, 0
  %877 = vmatprep.subr.mxu0 0.0
  %878 = vmatpush1.msra.mxu0 0.0
  %879 = vmatprep.subr.mxu0 0.0
  %880 = vmatpush1.msra.mxu0 0.0
  %881 = vmatprep.subr.mxu0 0.0
  %882 = vmatpush1.msra.mxu0 0.0
  %883 = vmatprep.subr.mxu0 0.0
  %884 = vmatpush1.msra.mxu0 0.0
  %885 = vmatprep.subr.mxu0 0.0
  %886 = vmatpush1.msra.mxu0 0.0
  %887 = vmatprep.subr.mxu0 0.0
  %888 = vmatpush1.msra.mxu0 0.0
  %889 = vmatprep.subr.mxu0 0.0
  %890 = vmatpush1.msra.mxu0 0.0
  %891 = vmatprep.subr.mxu0 0.0
  %892 = vmatpush1.msra.mxu0 0.0
  %893 = vmatprep.subr.mxu0 0.0
  %894 = vmatpush1.msra.mxu0 0.0
  %895 = vmatprep.subr.mxu0 0.0
  %896 = vmatpush1.msra.mxu0 0.0
  %897 = vmatprep.subr.mxu0 0.0
  %898 = vmatpush1.msra.mxu0 0.0
  %899 = vmatprep.subr.mxu0 0.0
  %900 = vmatpush1.msra.mxu0 0.0
  %901 = vmatprep.subr.mxu0 0.0
  %902 = vmatpush1.msra.mxu0 %v22
  %903 = vmatprep.subr.mxu0 0.0
  %904 = vmatpush1.msra.mxu0 %v21
  %905 = vmatprep.subr.mxu0 0.0
  %906 = vmatpush1.msra.mxu0 %v20
  %907 = vmatprep.subr.mxu0 0.0
  %908 = vmatpush1.msra.mxu0 %v19
  %909 = vmatprep.subr.mxu0 0.0
  %910 = vmatpush2.msra.mxu0 0.0
  %911 = vmatprep.subr.mxu0 0.0
  %912 = vmatpush2.msra.mxu0 0.0
  %913 = vmatprep.subr.mxu0 0.0
  %914 = vmatpush2.msra.mxu0 0.0
  %915 = vmatprep.subr.mxu0 0.0
  %916 = vmatpush2.msra.mxu0 0.0
  %917 = vmatprep.subr.mxu0 0.0
  %918 = vmatpush2.msra.mxu0 0.0
  %919 = vmatprep.subr.mxu0 0.0
  %920 = vmatpush2.msra.mxu0 0.0
  %921 = vmatprep.subr.mxu0 0.0
  %922 = vmatpush2.msra.mxu0 0.0
  %923 = vmatprep.subr.mxu0 0.0
  %924 = vmatpush2.msra.mxu0 0.0
  %925 = vmatprep.subr.mxu0 0.0
  %926 = vmatpush2.msra.mxu0 0.0
  %927 = vmatprep.subr.mxu0 0.0
  %928 = vmatpush2.msra.mxu0 0.0
  %929 = vmatprep.subr.mxu0 0.0
  %930 = vmatpush2.msra.mxu0 0.0
  %931 = vmatprep.subr.mxu0 0.0
  %932 = vmatpush2.msra.mxu0 0.0
  %933 = vmatprep.subr.mxu0 0.0
  %934 = vmatpush2.msra.mxu0 0.0
  %935 = vmatprep.subr.mxu0 0.0
  %936 = vmatpush2.msra.mxu0 0.0
  %937 = vmatprep.subr.mxu0 0.0
  %938 = vmatpush2.msra.mxu0 0.0
  %939 = vmatprep.subr.mxu0 0.0
  %940 = vmatpush2.msra.mxu0 0.0
  %941 = vmatprep.mubr.f32.mxu0 0.0
  %942 = vmatmul.mubr.f32.gmra.mxu0 %v875
  %v943 = vpop.f32.mrf.mxu0
  %v944 = vadd.f32 0.0, %v943
  %v945 = vpop.f32.mrf.mxu0
  %946 = vdwg.mxu0
  %v947 = vadd.f32 %v184, %v944
  %v948 = vmul.f32 %v947, %v192
  %v949 = vtanh.pop %v948
  %v950 = vmul.f32 %v949, %v192
  %v951 = vadd.f32 %v950, %v193
  %v952 = vmul.f32 %v951, %v865
  %954 = vrot.lane.b32.xlu0 %v951, 64
  %v955 = vpop.permute.xlu0 %954
  %v957 = vmul.f32 %v951, %v955
  %959 = vrot.lane.b32.xlu0 %v957, 32
  %v960 = vpop.permute.xlu0 %959
  %v962 = vadd.f32 %v952, %v960
  %v963 = vtanh.pop %v962
  %965 = vrot.lane.b32.xlu0 %v963, 64
  %v966 = vpop.permute.xlu0 %965
  %v968 = vmul.f32 %v951, %v966
  %v969 = vlaneseq
  %v970 = vshrl.u32 %v969, 7
  %v971 = vsub.s32 0, %v970
  %v972 = vrot.slane %v28, %v971
  %974 = vrot.lane.b32.xlu0 %v968, 32
  %v975 = vpop.permute.xlu0 %974
  %v976 = vsel %vm194, %v975, 0
  %978 = vmatprep.subr.mxu0 0.0
  %979 = vmatpush1.msra.mxu0 0.0
  %980 = vmatprep.subr.mxu0 0.0
  %981 = vmatpush1.msra.mxu0 0.0
  %982 = vmatprep.subr.mxu0 0.0
  %983 = vmatpush1.msra.mxu0 0.0
  %984 = vmatprep.subr.mxu0 0.0
  %985 = vmatpush1.msra.mxu0 0.0
  %986 = vmatprep.subr.mxu0 0.0
  %987 = vmatpush1.msra.mxu0 0.0
  %988 = vmatprep.subr.mxu0 0.0
  %989 = vmatpush1.msra.mxu0 0.0
  %990 = vmatprep.subr.mxu0 0.0
  %991 = vmatpush1.msra.mxu0 0.0
  %992 = vmatprep.subr.mxu0 0.0
  %993 = vmatpush1.msra.mxu0 0.0
  %994 = vmatprep.subr.mxu0 0.0
  %995 = vmatpush1.msra.mxu0 0.0
  %996 = vmatprep.subr.mxu0 0.0
  %997 = vmatpush1.msra.mxu0 0.0
  %998 = vmatprep.subr.mxu0 0.0
  %999 = vmatpush1.msra.mxu0 0.0
  %1000 = vmatprep.subr.mxu0 0.0
  %1001 = vmatpush1.msra.mxu0 0.0
  %1002 = vmatprep.subr.mxu0 0.0
  %1003 = vmatpush1.msra.mxu0 %v27
  %1004 = vmatprep.subr.mxu0 0.0
  %1005 = vmatpush1.msra.mxu0 %v26
  %1006 = vmatprep.subr.mxu0 0.0
  %1007 = vmatpush1.msra.mxu0 %v25
  %1008 = vmatprep.subr.mxu0 0.0
  %1009 = vmatpush1.msra.mxu0 %v24
  %1010 = vmatprep.subr.mxu0 0.0
  %1011 = vmatpush2.msra.mxu0 0.0
  %1012 = vmatprep.subr.mxu0 0.0
  %1013 = vmatpush2.msra.mxu0 0.0
  %1014 = vmatprep.subr.mxu0 0.0
  %1015 = vmatpush2.msra.mxu0 0.0
  %1016 = vmatprep.subr.mxu0 0.0
  %1017 = vmatpush2.msra.mxu0 0.0
  %1018 = vmatprep.subr.mxu0 0.0
  %1019 = vmatpush2.msra.mxu0 0.0
  %1020 = vmatprep.subr.mxu0 0.0
  %1021 = vmatpush2.msra.mxu0 0.0
  %1022 = vmatprep.subr.mxu0 0.0
  %1023 = vmatpush2.msra.mxu0 0.0
  %1024 = vmatprep.subr.mxu0 0.0
  %1025 = vmatpush2.msra.mxu0 0.0
  %1026 = vmatprep.subr.mxu0 0.0
  %1027 = vmatpush2.msra.mxu0 0.0
  %1028 = vmatprep.subr.mxu0 0.0
  %1029 = vmatpush2.msra.mxu0 0.0
  %1030 = vmatprep.subr.mxu0 0.0
  %1031 = vmatpush2.msra.mxu0 0.0
  %1032 = vmatprep.subr.mxu0 0.0
  %1033 = vmatpush2.msra.mxu0 0.0
  %1034 = vmatprep.subr.mxu0 0.0
  %1035 = vmatpush2.msra.mxu0 0.0
  %1036 = vmatprep.subr.mxu0 0.0
  %1037 = vmatpush2.msra.mxu0 0.0
  %1038 = vmatprep.subr.mxu0 0.0
  %1039 = vmatpush2.msra.mxu0 0.0
  %1040 = vmatprep.subr.mxu0 0.0
  %1041 = vmatpush2.msra.mxu0 0.0
  %1042 = vmatprep.mubr.f32.mxu0 0.0
  %1043 = vmatmul.mubr.f32.gmra.mxu0 %v293
  %v1044 = vpop.f32.mrf.mxu0
  %v1045 = vadd.f32 %v972, %v1044
  %v1046 = vpop.f32.mrf.mxu0
  %1047 = vmatprep.mubr.f32.mxu0 0.0
  %1048 = vmatmul.mubr.f32.gmra.mxu0 %v390
  %v1049 = vpop.f32.mrf.mxu0
  %v1050 = vadd.f32 %v972, %v1049
  %v1051 = vpop.f32.mrf.mxu0
  %1052 = vmatprep.mubr.f32.mxu0 0.0
  %1053 = vmatmul.mubr.f32.gmra.mxu0 %v487
  %v1054 = vpop.f32.mrf.mxu0
  %v1055 = vadd.f32 %v972, %v1054
  %v1056 = vpop.f32.mrf.mxu0
  %1057 = vmatprep.mubr.f32.mxu0 0.0
  %1058 = vmatmul.mubr.f32.gmra.mxu0 %v584
  %v1059 = vpop.f32.mrf.mxu0
  %v1060 = vadd.f32 %v972, %v1059
  %v1061 = vpop.f32.mrf.mxu0
  %1062 = vmatprep.mubr.f32.mxu0 0.0
  %1063 = vmatmul.mubr.f32.gmra.mxu0 %v681
  %v1064 = vpop.f32.mrf.mxu0
  %v1065 = vadd.f32 %v972, %v1064
  %v1066 = vpop.f32.mrf.mxu0
  %1067 = vmatprep.mubr.f32.mxu0 0.0
  %1068 = vmatmul.mubr.f32.gmra.mxu0 %v778
  %v1069 = vpop.f32.mrf.mxu0
  %v1070 = vadd.f32 %v972, %v1069
  %v1071 = vpop.f32.mrf.mxu0
  %1072 = vmatprep.mubr.f32.mxu0 0.0
  %1073 = vmatmul.mubr.f32.gmra.mxu0 %v875
  %v1074 = vpop.f32.mrf.mxu0
  %v1075 = vadd.f32 %v972, %v1074
  %v1076 = vpop.f32.mrf.mxu0
  %1077 = vmatprep.mubr.f32.mxu0 0.0
  %1078 = vmatmul.mubr.f32.gmra.mxu0 %v976
  %v1079 = vpop.f32.mrf.mxu0
  %v1080 = vadd.f32 %v972, %v1079
  %v1081 = vpop.f32.mrf.mxu0
  %1082 = vdwg.mxu0
  %v1083 = vtanh.pop %v1045
  %v1084 = vtanh.pop %v1050
  %v1085 = vtanh.pop %v1055
  %v1086 = vtanh.pop %v1060
  %v1087 = vtanh.pop %v1065
  %v1088 = vtanh.pop %v1070
  %v1089 = vtanh.pop %v1075
  %v1090 = vtanh.pop %v1080
  %1091 = vmatprep.subr.mxu0 0.0
  %1092 = vmatpush1.msra.mxu0 %v44
  %1093 = vmatprep.subr.mxu0 0.0
  %1094 = vmatpush1.msra.mxu0 %v43
  %1095 = vmatprep.subr.mxu0 0.0
  %1096 = vmatpush1.msra.mxu0 %v42
  %1097 = vmatprep.subr.mxu0 0.0
  %1098 = vmatpush1.msra.mxu0 %v41
  %1099 = vmatprep.subr.mxu0 0.0
  %1100 = vmatpush1.msra.mxu0 %v40
  %1101 = vmatprep.subr.mxu0 0.0
  %1102 = vmatpush1.msra.mxu0 %v39
  %1103 = vmatprep.subr.mxu0 0.0
  %1104 = vmatpush1.msra.mxu0 %v38
  %1105 = vmatprep.subr.mxu0 0.0
  %1106 = vmatpush1.msra.mxu0 %v37
  %1107 = vmatprep.subr.mxu0 0.0
  %1108 = vmatpush1.msra.mxu0 %v36
  %1109 = vmatprep.subr.mxu0 0.0
  %1110 = vmatpush1.msra.mxu0 %v35
  %1111 = vmatprep.subr.mxu0 0.0
  %1112 = vmatpush1.msra.mxu0 %v34
  %1113 = vmatprep.subr.mxu0 0.0
  %1114 = vmatpush1.msra.mxu0 %v33
  %1115 = vmatprep.subr.mxu0 0.0
  %1116 = vmatpush1.msra.mxu0 %v32
  %1117 = vmatprep.subr.mxu0 0.0
  %1118 = vmatpush1.msra.mxu0 %v31
  %1119 = vmatprep.subr.mxu0 0.0
  %1120 = vmatpush1.msra.mxu0 %v30
  %1121 = vmatprep.subr.mxu0 0.0
  %1122 = vmatpush1.msra.mxu0 %v29
  %1123 = vmatprep.subr.mxu0 0.0
  %1124 = vmatpush2.msra.mxu0 0.0
  %1125 = vmatprep.subr.mxu0 0.0
  %1126 = vmatpush2.msra.mxu0 0.0
  %1127 = vmatprep.subr.mxu0 0.0
  %1128 = vmatpush2.msra.mxu0 0.0
  %1129 = vmatprep.subr.mxu0 0.0
  %1130 = vmatpush2.msra.mxu0 0.0
  %1131 = vmatprep.subr.mxu0 0.0
  %1132 = vmatpush2.msra.mxu0 0.0
  %1133 = vmatprep.subr.mxu0 0.0
  %1134 = vmatpush2.msra.mxu0 0.0
  %1135 = vmatprep.subr.mxu0 0.0
  %1136 = vmatpush2.msra.mxu0 0.0
  %1137 = vmatprep.subr.mxu0 0.0
  %1138 = vmatpush2.msra.mxu0 0.0
  %1139 = vmatprep.subr.mxu0 0.0
  %1140 = vmatpush2.msra.mxu0 0.0
  %1141 = vmatprep.subr.mxu0 0.0
  %1142 = vmatpush2.msra.mxu0 0.0
  %1143 = vmatprep.subr.mxu0 0.0
  %1144 = vmatpush2.msra.mxu0 0.0
  %1145 = vmatprep.subr.mxu0 0.0
  %1146 = vmatpush2.msra.mxu0 0.0
  %1147 = vmatprep.subr.mxu0 0.0
  %1148 = vmatpush2.msra.mxu0 0.0
  %1149 = vmatprep.subr.mxu0 0.0
  %1150 = vmatpush2.msra.mxu0 0.0
  %1151 = vmatprep.subr.mxu0 0.0
  %1152 = vmatpush2.msra.mxu0 0.0
  %1153 = vmatprep.subr.mxu0 0.0
  %1154 = vmatpush2.msra.mxu0 0.0
  %1155 = vmatprep.mubr.f32.mxu0 0.0
  %1156 = vmatmul.mubr.f32.gmra.mxu0 %v1083
  %v1157 = vpop.f32.mrf.mxu0
  %v1158 = vadd.f32 0.0, %v1157
  %v1159 = vpop.f32.mrf.mxu0
  %1160 = vmatprep.mubr.f32.mxu0 0.0
  %1161 = vmatmul.mubr.f32.gmra.mxu0 %v1084
  %v1162 = vpop.f32.mrf.mxu0
  %v1163 = vadd.f32 0.0, %v1162
  %v1164 = vpop.f32.mrf.mxu0
  %1165 = vmatprep.mubr.f32.mxu0 0.0
  %1166 = vmatmul.mubr.f32.gmra.mxu0 %v1085
  %v1167 = vpop.f32.mrf.mxu0
  %v1168 = vadd.f32 0.0, %v1167
  %v1169 = vpop.f32.mrf.mxu0
  %1170 = vmatprep.mubr.f32.mxu0 0.0
  %1171 = vmatmul.mubr.f32.gmra.mxu0 %v1086
  %v1172 = vpop.f32.mrf.mxu0
  %v1173 = vadd.f32 0.0, %v1172
  %v1174 = vpop.f32.mrf.mxu0
  %1175 = vmatprep.mubr.f32.mxu0 0.0
  %1176 = vmatmul.mubr.f32.gmra.mxu0 %v1087
  %v1177 = vpop.f32.mrf.mxu0
  %v1178 = vadd.f32 0.0, %v1177
  %v1179 = vpop.f32.mrf.mxu0
  %1180 = vmatprep.mubr.f32.mxu0 0.0
  %1181 = vmatmul.mubr.f32.gmra.mxu0 %v1088
  %v1182 = vpop.f32.mrf.mxu0
  %v1183 = vadd.f32 0.0, %v1182
  %v1184 = vpop.f32.mrf.mxu0
  %1185 = vmatprep.mubr.f32.mxu0 0.0
  %1186 = vmatmul.mubr.f32.gmra.mxu0 %v1089
  %v1187 = vpop.f32.mrf.mxu0
  %v1188 = vadd.f32 0.0, %v1187
  %v1189 = vpop.f32.mrf.mxu0
  %1190 = vmatprep.mubr.f32.mxu0 0.0
  %1191 = vmatmul.mubr.f32.gmra.mxu0 %v1090
  %v1192 = vpop.f32.mrf.mxu0
  %v1193 = vadd.f32 0.0, %v1192
  %v1194 = vpop.f32.mrf.mxu0
  %1195 = vdwg.mxu0
  %vm1196 = vcmp.lt.s32.totalorder %v188, 16
  %v1197 = vsel %vm1196, %v1158, -1e+30
  %v1198 = vsel %vm1196, %v1163, -1e+30
  %v1199 = vsel %vm1196, %v1168, -1e+30
  %v1200 = vsel %vm1196, %v1173, -1e+30
  %v1201 = vsel %vm1196, %v1178, -1e+30
  %v1202 = vsel %vm1196, %v1183, -1e+30
  %v1203 = vsel %vm1196, %v1188, -1e+30
  %v1204 = vsel %vm1196, %v1193, -1e+30
  %1205 = vmax.xlane.f32.xlu0 %v1197
  %v1206 = vpop.xlane.xlu0 %1205
  %1207 = vmax.xlane.f32.xlu0 %v1198
  %v1208 = vpop.xlane.xlu0 %1207
  %1209 = vmax.xlane.f32.xlu0 %v1199
  %v1210 = vpop.xlane.xlu0 %1209
  %1211 = vmax.xlane.f32.xlu0 %v1200
  %v1212 = vpop.xlane.xlu0 %1211
  %1213 = vmax.xlane.f32.xlu0 %v1201
  %v1214 = vpop.xlane.xlu0 %1213
  %1215 = vmax.xlane.f32.xlu0 %v1202
  %v1216 = vpop.xlane.xlu0 %1215
  %1217 = vmax.xlane.f32.xlu0 %v1203
  %v1218 = vpop.xlane.xlu0 %1217
  %1219 = vmax.xlane.f32.xlu0 %v1204
  %v1220 = vpop.xlane.xlu0 %1219
  %v1221 = vsub.f32 %v1197, %v1206
  %v1222 = vsub.f32 %v1198, %v1208
  %v1223 = vsub.f32 %v1199, %v1210
  %v1224 = vsub.f32 %v1200, %v1212
  %v1225 = vsub.f32 %v1201, %v1214
  %v1226 = vsub.f32 %v1202, %v1216
  %v1227 = vsub.f32 %v1203, %v1218
  %v1228 = vsub.f32 %v1204, %v1220
  %v1229 = vmul.f32 %v1221, 1.442695
  %v1230 = vpow.pop %v1229
  %v1231 = vmul.f32 %v1222, 1.442695
  %v1232 = vpow.pop %v1231
  %v1233 = vmul.f32 %v1223, 1.442695
  %v1234 = vpow.pop %v1233
  %v1235 = vmul.f32 %v1224, 1.442695
  %v1236 = vpow.pop %v1235
  %v1237 = vmul.f32 %v1225, 1.442695
  %v1238 = vpow.pop %v1237
  %v1239 = vmul.f32 %v1226, 1.442695
  %v1240 = vpow.pop %v1239
  %v1241 = vmul.f32 %v1227, 1.442695
  %v1242 = vpow.pop %v1241
  %v1243 = vmul.f32 %v1228, 1.442695
  %v1244 = vpow.pop %v1243
  %1245 = vadd.xlane.f32.xlu0 %v1230
  %v1246 = vpop.xlane.xlu0 %1245
  %1247 = vadd.xlane.f32.xlu0 %v1232
  %v1248 = vpop.xlane.xlu0 %1247
  %1249 = vadd.xlane.f32.xlu0 %v1234
  %v1250 = vpop.xlane.xlu0 %1249
  %1251 = vadd.xlane.f32.xlu0 %v1236
  %v1252 = vpop.xlane.xlu0 %1251
  %1253 = vadd.xlane.f32.xlu0 %v1238
  %v1254 = vpop.xlane.xlu0 %1253
  %1255 = vadd.xlane.f32.xlu0 %v1240
  %v1256 = vpop.xlane.xlu0 %1255
  %1257 = vadd.xlane.f32.xlu0 %v1242
  %v1258 = vpop.xlane.xlu0 %1257
  %1259 = vadd.xlane.f32.xlu0 %v1244
  %v1260 = vpop.xlane.xlu0 %1259
  %v1261 = vlog2.pop %v1246
  %v1262 = vmul.f32 %v1261, 0.6931472
  %v1263 = vlog2.pop %v1248
  %v1264 = vmul.f32 %v1263, 0.6931472
  %v1265 = vlog2.pop %v1250
  %v1266 = vmul.f32 %v1265, 0.6931472
  %v1267 = vlog2.pop %v1252
  %v1268 = vmul.f32 %v1267, 0.6931472
  %v1269 = vlog2.pop %v1254
  %v1270 = vmul.f32 %v1269, 0.6931472
  %v1271 = vlog2.pop %v1256
  %v1272 = vmul.f32 %v1271, 0.6931472
  %v1273 = vlog2.pop %v1258
  %v1274 = vmul.f32 %v1273, 0.6931472
  %v1275 = vlog2.pop %v1260
  %v1276 = vmul.f32 %v1275, 0.6931472
  %v1277 = vadd.f32 %v1262, %v1206
  %v1278 = vadd.f32 %v1264, %v1208
  %v1279 = vadd.f32 %v1266, %v1210
  %v1280 = vadd.f32 %v1268, %v1212
  %v1281 = vadd.f32 %v1270, %v1214
  %v1282 = vadd.f32 %v1272, %v1216
  %v1283 = vadd.f32 %v1274, %v1218
  %v1284 = vadd.f32 %v1276, %v1220
  %v1285 = vsub.f32 %v1197, %v1277
  %v1286 = vsub.f32 %v1198, %v1278
  %v1287 = vsub.f32 %v1199, %v1279
  %v1288 = vsub.f32 %v1200, %v1280
  %v1289 = vsub.f32 %v1201, %v1281
  %v1290 = vsub.f32 %v1202, %v1282
  %v1291 = vsub.f32 %v1203, %v1283
  %v1292 = vsub.f32 %v1204, %v1284
  %1293 = vst [vmem:[%s2] sm:$0xff] %v1285
  %1294 = vst [vmem:[%s2 + $0x8] sm:$0xff] %v1286
  %1295 = vst [vmem:[%s2 + $0x10] sm:$0xff] %v1287
  %1296 = vst [vmem:[%s2 + $0x18] sm:$0xff] %v1288
  %1297 = vst [vmem:[%s2 + $0x20] sm:$0xff] %v1289
  %1298 = vst [vmem:[%s2 + $0x28] sm:$0xff] %v1290
  %1299 = vst [vmem:[%s2 + $0x30] sm:$0xff] %v1291
  %1300 = vst [vmem:[%s2 + $0x38] sm:$0xff] %v1292
  // Predicated region
  $region10: #{lstm_basic_forward.1} parent=0 // pred_check
    _
  $region11: #{lstm_basic_forward.1} parent=0 // pred_check_branch
    %1302 = sbr.rel (0) target = $region13
  $region12: #{lstm_basic_forward.1} parent=0 // pred_region
    _
  $region13: #{lstm_basic_forward.1} parent=0 // pred_fallthru
    _
  // Predicated region
  $region14: #{lstm_basic_forward.1} parent=0 // pred_check
    _
  $region15: #{lstm_basic_forward.1} parent=0 // pred_check_branch
    %1304 = sbr.rel (0) target = $region17
  $region16: #{lstm_basic_forward.1} parent=0 // pred_region
    _
  $region17: #{lstm_basic_forward.1} parent=0 // pred_fallthru
    _

</llo_original>
